<compile_context>
chip_gen: v7x
topology: tpu7x:2x2x1
jax: 0.10.0
libtpu: 0.0.40
codegen_flags: <defaults>
</compile_context>

<pallas_src>
import math

import jax
import jax.numpy as jnp
from jax import lax
from jax.experimental import pallas as pl
from jax.experimental.pallas import tpu as pltpu


_INV_SQRT2 = 1.0 / math.sqrt(2.0)


def _gelu_exact(x):
    # PyTorch F.gelu default = exact erf formulation (kept in f32).
    return 0.5 * x * (1.0 + lax.erf(x * _INV_SQRT2))


def _make_ff_kernel(approximate_gelu):
    def kernel(x_ref, wv_ref, bv_ref, wg_ref, bg_ref, w2_ref, b2_ref, o_ref):
        # Cast to bf16 in VMEM (perf review item 1): MXU operands bf16, f32 accumulate.
        x = x_ref[...].astype(jnp.bfloat16)                              # (TM, D)
        v = jnp.dot(x, wv_ref[...], preferred_element_type=jnp.float32) + bv_ref[...]
        g = jnp.dot(x, wg_ref[...], preferred_element_type=jnp.float32) + bg_ref[...]
        if approximate_gelu:
            act = jax.nn.gelu(g, approximate=True)     # tanh -> EUP (opt-in, not exact)
        else:
            act = _gelu_exact(g)                       # matches PyTorch default GELU
        h = (v * act).astype(jnp.bfloat16)             # GEGLU: value * gelu(gate)
        o_ref[...] = (jnp.dot(h, w2_ref[...], preferred_element_type=jnp.float32)
                      + b2_ref[...]).astype(o_ref.dtype)
    return kernel


def prepare_ff_params(w1, b1, w2, b2):
    """One-time parameter prep (hoisted out of the per-call path).

    Splits the fused GEGLU projection into value / gate halves (PyTorch chunk(2, -1):
    first half = value, second half = gate) and converts the MXU operands to bf16.

    w1: (dim, dim*mult*2)   b1: (dim*mult*2,)   w2: (dim*mult, dim)   b2: (dim,)
    """
    dmid, dout = w2.shape
    wv = w1[:, :dmid].astype(jnp.bfloat16)
    wg = w1[:, dmid:].astype(jnp.bfloat16)
    bv = b1[:dmid].reshape(1, dmid).astype(jnp.float32)
    bg = b1[dmid:].reshape(1, dmid).astype(jnp.float32)
    w2b = w2.astype(jnp.bfloat16)
    b2r = b2.reshape(1, dout).astype(jnp.float32)
    return (wv, bv, wg, bg, w2b, b2r)


def _choose_tm(rows, block_rows):
    """Pick an 8-aligned row tile with enough grid steps for pipelining."""
    tm = min(block_rows, max(8, rows))
    tm = ((tm + 7) // 8) * 8                           # sublane-aligned tile
    # Keep >= 4 grid steps (>= 2 per TensorCore on v7x) when the row count allows, so
    # BlockSpec double-buffering of the activation tiles actually overlaps DMA.
    while tm > 8 and (rows + tm - 1) // tm < 4:
        tm = max(8, ((tm // 2) // 8) * 8)
        if tm == 8:
            break
    # Prefer a tm that divides rows so the jnp.pad / out[:rows] copies disappear.
    if rows % 8 == 0 and rows % tm != 0:
        for cand in range(tm, max(8, tm // 2) - 1, -8):
            if rows % cand == 0:
                tm = cand
                break
    return tm


def _vmem_limit_bytes(tm, dim, dmid, dout, out_itemsize):
    w_bytes = (2 * dim * dmid + dmid * dout) * 2       # bf16 weights, single-buffered
    b_bytes = (2 * dmid + dout) * 4                    # f32 biases
    x_bytes = 2 * tm * dim * 4                         # f32 input tile, double-buffered
    o_bytes = 2 * tm * dout * out_itemsize             # output tile, double-buffered
    h_bytes = 3 * tm * dmid * 4                        # v / g / h working set (f32)
    need = w_bytes + b_bytes + x_bytes + o_bytes + h_bytes + (8 << 20)  # headroom
    return int(min(max(need, 32 << 20), 96 << 20))


def feed_forward(x, params, *, block_rows=512, out_dtype=jnp.float32,
                 approximate_gelu=False):
    """y = Linear2(GEGLU(Linear1(x))), PyTorch FeedForward(dim, mult) semantics.

    x:      (..., dim) float32
    params: output of prepare_ff_params(w1, b1, w2, b2)
    """
    wv, bv, wg, bg, w2, b2 = params
    orig_shape = x.shape
    dim = orig_shape[-1]
    dmid = w2.shape[0]                                 # dim * mult
    dout = w2.shape[1]                                 # dim

    x2 = x.reshape(-1, dim)
    rows = x2.shape[0]
    tm = _choose_tm(rows, block_rows)
    rows_p = pl.cdiv(rows, tm) * tm
    if rows_p != rows:
        x2 = jnp.pad(x2, ((0, rows_p - rows), (0, 0)))

    # Resident (constant-index) operands: weights stay in VMEM, single-buffered.
    def _resident(shape):
        return pl.BlockSpec(shape, lambda i: (0, 0), pipeline_mode=pl.Buffered(1))

    out = pl.pallas_call(
        _make_ff_kernel(approximate_gelu),
        out_shape=jax.ShapeDtypeStruct((rows_p, dout), out_dtype),
        grid=(rows_p // tm,),
        in_specs=[
            pl.BlockSpec((tm, dim), lambda i: (i, 0)),   # activation tiles stream (f32)
            _resident((dim, dmid)),                      # wv  (bf16)
            _resident((1, dmid)),                        # bv  (f32)
            _resident((dim, dmid)),                      # wg  (bf16)
            _resident((1, dmid)),                        # bg  (f32)
            _resident((dmid, dout)),                     # w2  (bf16)
            _resident((1, dout)),                        # b2  (f32)
        ],
        out_specs=pl.BlockSpec((tm, dout), lambda i: (i, 0)),
        compiler_params=pltpu.CompilerParams(
            dimension_semantics=("parallel",),           # v7x: shard rows over 2 TCs
            vmem_limit_bytes=_vmem_limit_bytes(
                tm, dim, dmid, dout, jnp.dtype(out_dtype).itemsize),
        ),
    )(x2, wv, bv, wg, bg, w2, b2)

    if rows_p != rows:
        out = out[:rows]
    return out.reshape(orig_shape[:-1] + (dout,))


# ----------------------------------------------------------------------------
# Pure-JAX references for correctness checking
# ----------------------------------------------------------------------------
def feed_forward_ref_f32(x, w1, b1, w2, b2):
    dmid = w2.shape[0]
    h = x @ w1 + b1
    v, g = h[..., :dmid], h[..., dmid:]
    return (v * _gelu_exact(g)) @ w2 + b2


def feed_forward_ref_bf16(x, w1, b1, w2, b2):
    # Same numeric path as the kernel: bf16 MXU operands, f32 accumulation/elementwise.
    dmid = w2.shape[0]
    h = jnp.dot(x.astype(jnp.bfloat16), w1.astype(jnp.bfloat16),
                preferred_element_type=jnp.float32) + b1
    v, g = h[..., :dmid], h[..., dmid:]
    hh = (v * _gelu_exact(g)).astype(jnp.bfloat16)
    return jnp.dot(hh, w2.astype(jnp.bfloat16),
                   preferred_element_type=jnp.float32) + b2


# ----------------------------------------------------------------------------
if __name__ == "__main__":
    key = jax.random.PRNGKey(0)
    k_x, k_w1, k_b1, k_w2, k_b2 = jax.random.split(key, 5)

    B, N, dim, mult = 2, 256, 128, 4
    dmid = dim * mult

    x = jax.random.normal(k_x, (B, N, dim), jnp.float32)
    w1 = (1.0 / math.sqrt(dim)) * jax.random.normal(k_w1, (dim, 2 * dmid), jnp.float32)
    b1 = 0.01 * jax.random.normal(k_b1, (2 * dmid,), jnp.float32)
    w2 = (1.0 / math.sqrt(dmid)) * jax.random.normal(k_w2, (dmid, dim), jnp.float32)
    b2 = 0.01 * jax.random.normal(k_b2, (dim,), jnp.float32)

    # One-time parameter prep (bf16 convert + value/gate split), outside the call path.
    params = prepare_ff_params(w1, b1, w2, b2)
    params = jax.tree_util.tree_map(jax.block_until_ready, params)

    fwd = jax.jit(feed_forward)
    out = fwd(x, params)
    jax.block_until_ready(out)

    assert out.shape == (B, N, dim), out.shape
    assert bool(jnp.all(jnp.isfinite(out)))

    # Tight check against the identical bf16-operand math path.
    ref_bf16 = feed_forward_ref_bf16(x, w1, b1, w2, b2)
    err_bf16 = float(jnp.max(jnp.abs(out - ref_bf16)))
    assert bool(jnp.allclose(out, ref_bf16, atol=1e-2, rtol=1e-2)), err_bf16

    # Loose check against the full-f32 PyTorch-equivalent math.
    ref_f32 = feed_forward_ref_f32(x, w1, b1, w2, b2)
    err_f32 = float(jnp.max(jnp.abs(out - ref_f32)))
    assert bool(jnp.allclose(out, ref_f32, atol=1e-1, rtol=1e-1)), err_f32

    print("KERNEL_OK")
</pallas_src>

<mosaic_0001>
module attributes {stable_mosaic.version = 11 : i64} {
  func.func @kernel(%arg0: i32, %arg1: memref<128x128xf32, #tpu.memory_space<vmem>>, %arg2: memref<128x512xbf16, #tpu.memory_space<vmem>>, %arg3: memref<1x512xf32, #tpu.memory_space<vmem>>, %arg4: memref<128x512xbf16, #tpu.memory_space<vmem>>, %arg5: memref<1x512xf32, #tpu.memory_space<vmem>>, %arg6: memref<512x128xbf16, #tpu.memory_space<vmem>>, %arg7: memref<1x128xf32, #tpu.memory_space<vmem>>, %arg8: memref<128x128xf32, #tpu.memory_space<vmem>>) attributes {dimension_semantics = [#tpu.dimension_semantics<parallel>], iteration_bounds = array<i64: 4>, scalar_prefetch = 0 : i64, scratch_operands = 0 : i64, tpu.core_type = #tpu.core_type<tc>, window_params = [{transform_indices = @transform_0, window_bounds = array<i64: 128, 128>}, {pipeline_mode = #tpu.pipeline_mode<synchronous>, transform_indices = @transform_1, window_bounds = array<i64: 128, 512>}, {pipeline_mode = #tpu.pipeline_mode<synchronous>, transform_indices = @transform_2, window_bounds = array<i64: 1, 512>}, {pipeline_mode = #tpu.pipeline_mode<synchronous>, transform_indices = @transform_3, window_bounds = array<i64: 128, 512>}, {pipeline_mode = #tpu.pipeline_mode<synchronous>, transform_indices = @transform_4, window_bounds = array<i64: 1, 512>}, {pipeline_mode = #tpu.pipeline_mode<synchronous>, transform_indices = @transform_5, window_bounds = array<i64: 512, 128>}, {pipeline_mode = #tpu.pipeline_mode<synchronous>, transform_indices = @transform_6, window_bounds = array<i64: 1, 128>}, {transform_indices = @transform_7, window_bounds = array<i64: 128, 128>}]} {
    %c0 = arith.constant 0 : index
    %c0_0 = arith.constant 0 : index
    %0 = vector.load %arg1[%c0, %c0_0] : memref<128x128xf32, #tpu.memory_space<vmem>>, vector<128x128xf32>
    %1 = arith.truncf %0 : vector<128x128xf32> to vector<128x128xbf16>
    %c0_1 = arith.constant 0 : index
    %c0_2 = arith.constant 0 : index
    %2 = vector.load %arg2[%c0_1, %c0_2] : memref<128x512xbf16, #tpu.memory_space<vmem>>, vector<128x512xbf16>
    %cst = arith.constant dense<0.000000e+00> : vector<128x512xf32>
    %3 = tpu.matmul %1, %2, %cst {dimension_numbers = #tpu.dot_dimension_numbers<[1], [0], [0], [1], [0, 0, 1, 1], [], []>} : vector<128x128xbf16>, vector<128x512xbf16>, vector<128x512xf32> -> vector<128x512xf32>
    %c0_3 = arith.constant 0 : index
    %c0_4 = arith.constant 0 : index
    %4 = vector.load %arg3[%c0_3, %c0_4] : memref<1x512xf32, #tpu.memory_space<vmem>>, vector<1x512xf32>
    %5 = vector.broadcast %4 : vector<1x512xf32> to vector<128x512xf32>
    %6 = arith.addf %3, %5 : vector<128x512xf32>
    %c0_5 = arith.constant 0 : index
    %c0_6 = arith.constant 0 : index
    %7 = vector.load %arg4[%c0_5, %c0_6] : memref<128x512xbf16, #tpu.memory_space<vmem>>, vector<128x512xbf16>
    %cst_7 = arith.constant dense<0.000000e+00> : vector<128x512xf32>
    %8 = tpu.matmul %1, %7, %cst_7 {dimension_numbers = #tpu.dot_dimension_numbers<[1], [0], [0], [1], [0, 0, 1, 1], [], []>} : vector<128x128xbf16>, vector<128x512xbf16>, vector<128x512xf32> -> vector<128x512xf32>
    %c0_8 = arith.constant 0 : index
    %c0_9 = arith.constant 0 : index
    %9 = vector.load %arg5[%c0_8, %c0_9] : memref<1x512xf32, #tpu.memory_space<vmem>>, vector<1x512xf32>
    %10 = vector.broadcast %9 : vector<1x512xf32> to vector<128x512xf32>
    %11 = arith.addf %8, %10 : vector<128x512xf32>
    %cst_10 = arith.constant 5.000000e-01 : f32
    %12 = vector.broadcast %cst_10 : f32 to vector<128x512xf32>
    %13 = arith.mulf %12, %11 : vector<128x512xf32>
    %cst_11 = arith.constant 0.707106769 : f32
    %14 = vector.broadcast %cst_11 : f32 to vector<128x512xf32>
    %15 = arith.mulf %11, %14 : vector<128x512xf32>
    %16 = math.erf %15 : vector<128x512xf32>
    %cst_12 = arith.constant 1.000000e+00 : f32
    %17 = vector.broadcast %cst_12 : f32 to vector<128x512xf32>
    %18 = arith.addf %17, %16 : vector<128x512xf32>
    %19 = arith.mulf %13, %18 : vector<128x512xf32>
    %20 = arith.mulf %6, %19 : vector<128x512xf32>
    %21 = arith.truncf %20 : vector<128x512xf32> to vector<128x512xbf16>
    %c0_13 = arith.constant 0 : index
    %c0_14 = arith.constant 0 : index
    %22 = vector.load %arg6[%c0_13, %c0_14] : memref<512x128xbf16, #tpu.memory_space<vmem>>, vector<512x128xbf16>
    %cst_15 = arith.constant dense<0.000000e+00> : vector<128x128xf32>
    %23 = tpu.matmul %21, %22, %cst_15 {dimension_numbers = #tpu.dot_dimension_numbers<[1], [0], [0], [1], [0, 0, 1, 1], [], []>} : vector<128x512xbf16>, vector<512x128xbf16>, vector<128x128xf32> -> vector<128x128xf32>
    %c0_16 = arith.constant 0 : index
    %c0_17 = arith.constant 0 : index
    %24 = vector.load %arg7[%c0_16, %c0_17] : memref<1x128xf32, #tpu.memory_space<vmem>>, vector<1x128xf32>
    %25 = vector.broadcast %24 : vector<1x128xf32> to vector<128x128xf32>
    %26 = arith.addf %23, %25 : vector<128x128xf32>
    %c0_18 = arith.constant 0 : index
    %c0_19 = arith.constant 0 : index
    %27 = vector.load %arg8[%c0_18, %c0_19] : memref<128x128xf32, #tpu.memory_space<vmem>>, vector<128x128xf32>
    tpu.vector_store %arg8[%c0_18, %c0_19], %26 {strides = array<i32>} : memref<128x128xf32, #tpu.memory_space<vmem>>, vector<128x128xf32>,
    return
  }
  func.func @transform_0(%arg0: i32) -> (i32, i32) {
    %c0_i32 = arith.constant 0 : i32
    %c0_i32_0 = arith.constant 0 : i32
    return %arg0, %c0_i32 : i32, i32
  }
  func.func @transform_1(%arg0: i32) -> (i32, i32) {
    %c0_i32 = arith.constant 0 : i32
    %c0_i32_0 = arith.constant 0 : i32
    %c0_i32_1 = arith.constant 0 : i32
    return %c0_i32, %c0_i32_0 : i32, i32
  }
  func.func @transform_2(%arg0: i32) -> (i32, i32) {
    %c0_i32 = arith.constant 0 : i32
    %c0_i32_0 = arith.constant 0 : i32
    %c0_i32_1 = arith.constant 0 : i32
    return %c0_i32, %c0_i32_0 : i32, i32
  }
  func.func @transform_3(%arg0: i32) -> (i32, i32) {
    %c0_i32 = arith.constant 0 : i32
    %c0_i32_0 = arith.constant 0 : i32
    %c0_i32_1 = arith.constant 0 : i32
    return %c0_i32, %c0_i32_0 : i32, i32
  }
  func.func @transform_4(%arg0: i32) -> (i32, i32) {
    %c0_i32 = arith.constant 0 : i32
    %c0_i32_0 = arith.constant 0 : i32
    %c0_i32_1 = arith.constant 0 : i32
    return %c0_i32, %c0_i32_0 : i32, i32
  }
  func.func @transform_5(%arg0: i32) -> (i32, i32) {
    %c0_i32 = arith.constant 0 : i32
    %c0_i32_0 = arith.constant 0 : i32
    %c0_i32_1 = arith.constant 0 : i32
    return %c0_i32, %c0_i32_0 : i32, i32
  }
  func.func @transform_6(%arg0: i32) -> (i32, i32) {
    %c0_i32 = arith.constant 0 : i32
    %c0_i32_0 = arith.constant 0 : i32
    %c0_i32_1 = arith.constant 0 : i32
    return %c0_i32, %c0_i32_0 : i32, i32
  }
  func.func @transform_7(%arg0: i32) -> (i32, i32) {
    %c0_i32 = arith.constant 0 : i32
    %c0_i32_0 = arith.constant 0 : i32
    return %arg0, %c0_i32 : i32, i32
  }
}

</mosaic_0001>

<llo_original>
// kernel: feed_forward.1
$region0: #{feed_forward.1}
  #allocation0 [shape = 'u32[]', space=smem, size = 0x4, offset = 0x4, fixed_abs, tag = 'smem constant byte address 0x4 - core index']
  #allocation1 [shape = 'u32[144,128]{1,0:T(1,128)}', space=vmem, size = 0x12000, scoped, tag = 'internal scratch']
  %s0 = inlined_call_operand.hbm [shape: f32[512,128], index: 0, kind: input, shape index: {}]
  %s1 = inlined_call_operand.hbm [shape: bf16[128,512], index: 1, kind: input, shape index: {}]
  %s2 = inlined_call_operand.vmem [shape: f32[1,512], index: 2, kind: input, shape index: {}]
  %s3 = inlined_call_operand.hbm [shape: bf16[128,512], index: 3, kind: input, shape index: {}]
  %s4 = inlined_call_operand.vmem [shape: f32[1,512], index: 4, kind: input, shape index: {}]
  %s5 = inlined_call_operand.hbm [shape: bf16[512,128], index: 5, kind: input, shape index: {}]
  %s6 = inlined_call_operand.vmem [shape: f32[1,128], index: 6, kind: input, shape index: {}]
  %s7 = inlined_call_operand.hbm [shape: f32[512,128], index: 7, kind: output, shape index: {}]
  %s8 = sld [smem:[#allocation0]]
  $region77: #{feed_forward.1} parent=0
    _
  %s10 = ssub.s32 1, %s8
  %s11 = scalar_select 0, %s10, %s8
  $region1: #{feed_forward.1} parent=0
    #allocation2 [shape = 'u8[131072]{0}', space=vmem, size = 0x20000, scoped, tag = 'input window, operand 0']
    #allocation3 [shape = 's32[2]{0}', space=sflag, size = 0x8, scoped, tag = 'scoped memory for feed_forward.1']
    #allocation4 [shape = 's32[2]{0}', space=sflag, size = 0x8, scoped, tag = 'scoped memory for feed_forward.1']
    #allocation5 [shape = 'u8[131072]{0}', space=vmem, size = 0x20000, scoped, tag = 'input window, operand 1, single buffered']
    #allocation6 [shape = 's32[1]{0}', space=sflag, size = 0x4, scoped, tag = 'scoped memory for feed_forward.1']
    #allocation7 [shape = 'u8[131072]{0}', space=vmem, size = 0x20000, scoped, tag = 'input window, operand 3, single buffered']
    #allocation8 [shape = 'u8[131072]{0}', space=vmem, size = 0x20000, scoped, tag = 'input window, operand 5, single buffered']
    #allocation9 [shape = 's32[1]{0}', space=sflag, size = 0x4, scoped, tag = 'scoped memory for feed_forward.1']
    #allocation10 [shape = 'u8[131072]{0}', space=vmem, size = 0x20000, scoped, tag = 'output window, operand 0']
    %12 = vsyncpa [#allocation3], 0
    %s13 = scalar_lea.sflag [#allocation3], 1
    %14 = vsyncpa %s13, 0
    %15 = vsyncpa [#allocation6], 0
    %16 = vsyncpa [#allocation9], 0
    %17 = vsyncpa [#allocation4], 0
    %s18 = scalar_lea.sflag [#allocation4], 1
    %19 = vsyncpa %s18, 0
    loop: start=0, step=1, limit=6
    $region2: #{feed_forward.1} parent=1 // loop_pre_header
      _
    $region3: #{feed_forward.1} parent=1 // loop_header
      %s21 = sphi 0, %s25
      %p22 = scmp.ge.s32.totalorder %s21, 6
      %s31 = sphi 0, %s33
      %s34 = sphi 0, %s31
      %s35 = sphi 0, %s34
      %s51 = sphi 0, %s35
      %s55 = sphi 0, %s55
      %s57 = sphi 0, %s55
      %s58 = sphi 0, %s57
      %s72 = sphi 0, %s58
      %s76 = sphi 0, %s76
      %s78 = sphi 0, %s76
      %s79 = sphi 0, %s78
      %s93 = sphi 0, %s79
      %s97 = sphi 0, %s97
      %s99 = sphi 0, %s97
      %s100 = sphi 0, %s99
      %s114 = sphi 0, %s100
      %s118 = sphi 0, %s118
      %s120 = sphi 0, %s118
      %s121 = sphi 0, %s120
      %s135 = sphi 0, %s121
      %s139 = sphi 0, %s139
      %s141 = sphi 0, %s139
      %s142 = sphi 0, %s141
      %s156 = sphi 0, %s142
      %s160 = sphi 0, %s160
      %s162 = sphi 0, %s160
      %s163 = sphi 0, %s162
      %s177 = sphi 0, %s163
      %s183 = sphi 0, %s185
      %s186 = sphi 0, %s183
      %s187 = sphi 0, %s186
      %s203 = sphi 0, %s187
    $region4: #{feed_forward.1} parent=1 // loop_header_branch
      %24 = sbr.rel (%p22) target = $region8
    $region5: #{feed_forward.1} parent=1 // loop_body
      %s26 = ssub.s32 %s21, 1
      %s27 = ssub.s32 %s21, 2
      %s28 = sadd.s32 %s21, 1
      %s29 = ssub.s32 %s21, %s28
      %p30 = scmp.eq.s32.totalorder %s29, 0
      %s32 = sadd.s32 %s31, 1
      %s33 = scalar_select %p30, %s31, %s32
      %p36 = pneg %p30
      %p37 = scmp.eq.s32.totalorder %s21, 3
      %p38 = por %p36, %p37
      %p39 = scmp.ne.s32.totalorder %s31, %s34
      %p40 = scmp.eq.s32.totalorder %s21, 0
      %p41 = por %p39, %p40
      %p42 = scmp.ne.s32.totalorder %s31, %s34
      %p43 = scmp.eq.s32.totalorder %s26, 3
      %p44 = por %p42, %p43
      %p45 = scmp.ne.s32.totalorder %s34, %s35
      %p46 = scmp.eq.s32.totalorder %s26, 0
      %p47 = por %p45, %p46
      %p48 = scmp.ne.s32.totalorder %s34, %s35
      %p49 = scmp.eq.s32.totalorder %s27, 3
      %p50 = por %p48, %p49
      %p52 = scmp.ne.s32.totalorder %s35, %s51
      %p53 = scmp.eq.s32.totalorder %s27, 0
      %p54 = por %p52, %p53
      %s56 = sadd.s32 %s55, 1
      %p59 = scmp.eq.s32.totalorder %s21, 3
      %p60 = scmp.ne.s32.totalorder %s55, %s57
      %p61 = scmp.eq.s32.totalorder %s21, 0
      %p62 = por %p60, %p61
      %p63 = scmp.ne.s32.totalorder %s55, %s57
      %p64 = scmp.eq.s32.totalorder %s26, 3
      %p65 = por %p63, %p64
      %p66 = scmp.ne.s32.totalorder %s57, %s58
      %p67 = scmp.eq.s32.totalorder %s26, 0
      %p68 = por %p66, %p67
      %p69 = scmp.ne.s32.totalorder %s57, %s58
      %p70 = scmp.eq.s32.totalorder %s27, 3
      %p71 = por %p69, %p70
      %p73 = scmp.ne.s32.totalorder %s58, %s72
      %p74 = scmp.eq.s32.totalorder %s27, 0
      %p75 = por %p73, %p74
      %s77 = sadd.s32 %s76, 1
      %p80 = scmp.eq.s32.totalorder %s21, 3
      %p81 = scmp.ne.s32.totalorder %s76, %s78
      %p82 = scmp.eq.s32.totalorder %s21, 0
      %p83 = por %p81, %p82
      %p84 = scmp.ne.s32.totalorder %s76, %s78
      %p85 = scmp.eq.s32.totalorder %s26, 3
      %p86 = por %p84, %p85
      %p87 = scmp.ne.s32.totalorder %s78, %s79
      %p88 = scmp.eq.s32.totalorder %s26, 0
      %p89 = por %p87, %p88
      %p90 = scmp.ne.s32.totalorder %s78, %s79
      %p91 = scmp.eq.s32.totalorder %s27, 3
      %p92 = por %p90, %p91
      %p94 = scmp.ne.s32.totalorder %s79, %s93
      %p95 = scmp.eq.s32.totalorder %s27, 0
      %p96 = por %p94, %p95
      %s98 = sadd.s32 %s97, 1
      %p101 = scmp.eq.s32.totalorder %s21, 3
      %p102 = scmp.ne.s32.totalorder %s97, %s99
      %p103 = scmp.eq.s32.totalorder %s21, 0
      %p104 = por %p102, %p103
      %p105 = scmp.ne.s32.totalorder %s97, %s99
      %p106 = scmp.eq.s32.totalorder %s26, 3
      %p107 = por %p105, %p106
      %p108 = scmp.ne.s32.totalorder %s99, %s100
      %p109 = scmp.eq.s32.totalorder %s26, 0
      %p110 = por %p108, %p109
      %p111 = scmp.ne.s32.totalorder %s99, %s100
      %p112 = scmp.eq.s32.totalorder %s27, 3
      %p113 = por %p111, %p112
      %p115 = scmp.ne.s32.totalorder %s100, %s114
      %p116 = scmp.eq.s32.totalorder %s27, 0
      %p117 = por %p115, %p116
      %s119 = sadd.s32 %s118, 1
      %p122 = scmp.eq.s32.totalorder %s21, 3
      %p123 = scmp.ne.s32.totalorder %s118, %s120
      %p124 = scmp.eq.s32.totalorder %s21, 0
      %p125 = por %p123, %p124
      %p126 = scmp.ne.s32.totalorder %s118, %s120
      %p127 = scmp.eq.s32.totalorder %s26, 3
      %p128 = por %p126, %p127
      %p129 = scmp.ne.s32.totalorder %s120, %s121
      %p130 = scmp.eq.s32.totalorder %s26, 0
      %p131 = por %p129, %p130
      %p132 = scmp.ne.s32.totalorder %s120, %s121
      %p133 = scmp.eq.s32.totalorder %s27, 3
      %p134 = por %p132, %p133
      %p136 = scmp.ne.s32.totalorder %s121, %s135
      %p137 = scmp.eq.s32.totalorder %s27, 0
      %p138 = por %p136, %p137
      %s140 = sadd.s32 %s139, 1
      %p143 = scmp.eq.s32.totalorder %s21, 3
      %p144 = scmp.ne.s32.totalorder %s139, %s141
      %p145 = scmp.eq.s32.totalorder %s21, 0
      %p146 = por %p144, %p145
      %p147 = scmp.ne.s32.totalorder %s139, %s141
      %p148 = scmp.eq.s32.totalorder %s26, 3
      %p149 = por %p147, %p148
      %p150 = scmp.ne.s32.totalorder %s141, %s142
      %p151 = scmp.eq.s32.totalorder %s26, 0
      %p152 = por %p150, %p151
      %p153 = scmp.ne.s32.totalorder %s141, %s142
      %p154 = scmp.eq.s32.totalorder %s27, 3
      %p155 = por %p153, %p154
      %p157 = scmp.ne.s32.totalorder %s142, %s156
      %p158 = scmp.eq.s32.totalorder %s27, 0
      %p159 = por %p157, %p158
      %s161 = sadd.s32 %s160, 1
      %p164 = scmp.eq.s32.totalorder %s21, 3
      %p165 = scmp.ne.s32.totalorder %s160, %s162
      %p166 = scmp.eq.s32.totalorder %s21, 0
      %p167 = por %p165, %p166
      %p168 = scmp.ne.s32.totalorder %s160, %s162
      %p169 = scmp.eq.s32.totalorder %s26, 3
      %p170 = por %p168, %p169
      %p171 = scmp.ne.s32.totalorder %s162, %s163
      %p172 = scmp.eq.s32.totalorder %s26, 0
      %p173 = por %p171, %p172
      %p174 = scmp.ne.s32.totalorder %s162, %s163
      %p175 = scmp.eq.s32.totalorder %s27, 3
      %p176 = por %p174, %p175
      %p178 = scmp.ne.s32.totalorder %s163, %s177
      %p179 = scmp.eq.s32.totalorder %s27, 0
      %p180 = por %p178, %p179
      %s181 = ssub.s32 %s21, %s28
      %p182 = scmp.eq.s32.totalorder %s181, 0
      %s184 = sadd.s32 %s183, 1
      %s185 = scalar_select %p182, %s183, %s184
      %p188 = pneg %p182
      %p189 = scmp.eq.s32.totalorder %s21, 3
      %p190 = por %p188, %p189
      %p191 = scmp.ne.s32.totalorder %s183, %s186
      %p192 = scmp.eq.s32.totalorder %s21, 0
      %p193 = por %p191, %p192
      %p194 = scmp.ne.s32.totalorder %s183, %s186
      %p195 = scmp.eq.s32.totalorder %s26, 3
      %p196 = por %p194, %p195
      %p197 = scmp.ne.s32.totalorder %s186, %s187
      %p198 = scmp.eq.s32.totalorder %s26, 0
      %p199 = por %p197, %p198
      %p200 = scmp.ne.s32.totalorder %s186, %s187
      %p201 = scmp.eq.s32.totalorder %s27, 3
      %p202 = por %p200, %p201
      %p204 = scmp.ne.s32.totalorder %s187, %s203
      %p205 = scmp.eq.s32.totalorder %s27, 0
      %p206 = por %p204, %p205
      %p207 = scmp.le.s32.totalorder 1, %s21
      %p208 = scmp.lt.s32.totalorder %s21, 5
      %p209 = pnand %p207, %p208
      %p210 = pneg %p209
      // Predicated region
      $region9: #{feed_forward.1} parent=5 // pred_check
        _
      $region10: #{feed_forward.1} parent=5 // pred_check_branch
        %212 = sbr.rel (%p209) target = $region12
      $region11: #{feed_forward.1} parent=5 // pred_region
        %s213 = ssub.s32 %s21, 1
        // Predicated region
        $region13: #{feed_forward.1} parent=11 // pred_check
          %p214 = pneg %p68
        $region14: #{feed_forward.1} parent=11 // pred_check_branch
          %216 = sbr.rel (%p214) target = $region16
        $region15: #{feed_forward.1} parent=11 // pred_region
          %s218 = ssub.s32 4096, 4096
          %219 = vsyncadd [#allocation6], %s218
          %s220 = sshll.u32 [#allocation5], 4
          %s221 = int_to_ptr.vmem [resolvable:$true] %s220
          %226 = dma.hbm_to_vmem [thread:$0]  %s1, 4096, %s221, [#allocation6], 256, 256, 16
        $region16: #{feed_forward.1} parent=11 // pred_fallthru
          _
        // Predicated region
        $region17: #{feed_forward.1} parent=11 // pred_check
          %p227 = pneg %p89
        $region18: #{feed_forward.1} parent=11 // pred_check_branch
          %229 = sbr.rel (%p227) target = $region20
        $region19: #{feed_forward.1} parent=11 // pred_region
          _
        $region20: #{feed_forward.1} parent=11 // pred_fallthru
          _
        // Predicated region
        $region21: #{feed_forward.1} parent=11 // pred_check
          %p230 = pneg %p110
        $region22: #{feed_forward.1} parent=11 // pred_check_branch
          %232 = sbr.rel (%p230) target = $region24
        $region23: #{feed_forward.1} parent=11 // pred_region
          %s234 = ssub.s32 4096, 4096
          %235 = vsyncadd [#allocation6], %s234
          %s236 = sshll.u32 [#allocation7], 4
          %s237 = int_to_ptr.vmem [resolvable:$true] %s236
          %242 = dma.hbm_to_vmem [thread:$0]  %s3, 4096, %s237, [#allocation6], 256, 256, 16
        $region24: #{feed_forward.1} parent=11 // pred_fallthru
          _
        // Predicated region
        $region25: #{feed_forward.1} parent=11 // pred_check
          %p243 = pneg %p131
        $region26: #{feed_forward.1} parent=11 // pred_check_branch
          %245 = sbr.rel (%p243) target = $region28
        $region27: #{feed_forward.1} parent=11 // pred_region
          _
        $region28: #{feed_forward.1} parent=11 // pred_fallthru
          _
        // Predicated region
        $region29: #{feed_forward.1} parent=11 // pred_check
          %p246 = pneg %p152
        $region30: #{feed_forward.1} parent=11 // pred_check_branch
          %248 = sbr.rel (%p246) target = $region32
        $region31: #{feed_forward.1} parent=11 // pred_region
          %s250 = ssub.s32 4096, 4096
          %251 = vsyncadd [#allocation9], %s250
          %s252 = sshll.u32 [#allocation8], 4
          %s253 = int_to_ptr.vmem [resolvable:$true] %s252
          %258 = dma.hbm_to_vmem [thread:$0]  %s5, 4096, %s253, [#allocation9], 64, 64, 4
        $region32: #{feed_forward.1} parent=11 // pred_fallthru
          _
        // Predicated region
        $region33: #{feed_forward.1} parent=11 // pred_check
          %p259 = pneg %p173
        $region34: #{feed_forward.1} parent=11 // pred_check_branch
          %261 = sbr.rel (%p259) target = $region36
        $region35: #{feed_forward.1} parent=11 // pred_region
          _
        $region36: #{feed_forward.1} parent=11 // pred_fallthru
          _
      $region12: #{feed_forward.1} parent=5 // pred_fallthru
        _
      %p262 = scmp.lt.s32.totalorder %s21, 4
      // Predicated region
      $region37: #{feed_forward.1} parent=5 // pred_check
        %p263 = pneg %p262
      $region38: #{feed_forward.1} parent=5 // pred_check_branch
        %265 = sbr.rel (%p263) target = $region40
      $region39: #{feed_forward.1} parent=5 // pred_region
        // Predicated region
        $region41: #{feed_forward.1} parent=39 // pred_check
          %p266 = pneg %p41
        $region42: #{feed_forward.1} parent=39 // pred_check_branch
          %268 = sbr.rel (%p266) target = $region44
        $region43: #{feed_forward.1} parent=39 // pred_region
          %s269 = sand.u32 %s31, 1
          %s270 = scalar_lea.sflag [#allocation3], %s269
          %s271 = sand.u32 %s31, 1
          %s272 = smul.addr %s271, 128
          %s273 = scalar_lea.vmem [#allocation2], %s272
          %s274 = smul.u32 16, %s21
          %s276 = ssub.s32 2048, 2048
          %277 = vsyncadd %s270, %s276
          %s278 = smul.addr %s274, 128
          %s279 = scalar_lea.hbm %s0, %s278
          %s280 = sshll.u32 %s273, 4
          %s281 = int_to_ptr.vmem [resolvable:$true] %s280
          %286 = dma.hbm_to_vmem [thread:$0]  %s279, 2048, %s281, %s270, 128, 128, 8
        $region44: #{feed_forward.1} parent=39 // pred_fallthru
          _
      $region40: #{feed_forward.1} parent=5 // pred_fallthru
        _
      %p287 = scmp.le.s32.totalorder 1, %s21
      %p288 = scmp.lt.s32.totalorder %s21, 5
      %p289 = pnand %p287, %p288
      %p290 = pneg %p289
      // Predicated region
      $region45: #{feed_forward.1} parent=5 // pred_check
        _
      $region46: #{feed_forward.1} parent=5 // pred_check_branch
        %292 = sbr.rel (%p289) target = $region48
      $region47: #{feed_forward.1} parent=5 // pred_region
        %s293 = ssub.s32 %s21, 1
        %s294 = sand.u32 %s34, 1
        %s295 = scalar_lea.sflag [#allocation3], %s294
        %s296 = sand.u32 %s34, 1
        %s297 = smul.addr %s296, 128
        %s298 = scalar_lea.vmem [#allocation2], %s297
        // Predicated region
        $region49: #{feed_forward.1} parent=47 // pred_check
          %p299 = pneg %p47
        $region50: #{feed_forward.1} parent=47 // pred_check_branch
          %301 = sbr.rel (%p299) target = $region52
        $region51: #{feed_forward.1} parent=47 // pred_region
          %302 = dma.done %s295, 2048
        $region52: #{feed_forward.1} parent=47 // pred_fallthru
          _
        // Predicated region
        $region53: #{feed_forward.1} parent=47 // pred_check
          %p303 = pneg %p68
        $region54: #{feed_forward.1} parent=47 // pred_check_branch
          %305 = sbr.rel (%p303) target = $region56
        $region55: #{feed_forward.1} parent=47 // pred_region
          %306 = dma.done [#allocation6], 4096
        $region56: #{feed_forward.1} parent=47 // pred_fallthru
          _
        // Predicated region
        $region57: #{feed_forward.1} parent=47 // pred_check
          %p307 = pneg %p110
        $region58: #{feed_forward.1} parent=47 // pred_check_branch
          %309 = sbr.rel (%p307) target = $region60
        $region59: #{feed_forward.1} parent=47 // pred_region
          %310 = dma.done [#allocation6], 4096
        $region60: #{feed_forward.1} parent=47 // pred_fallthru
          _
        // Predicated region
        $region61: #{feed_forward.1} parent=47 // pred_check
          %p311 = pneg %p152
        $region62: #{feed_forward.1} parent=47 // pred_check_branch
          %313 = sbr.rel (%p311) target = $region64
        $region63: #{feed_forward.1} parent=47 // pred_region
          %314 = dma.done [#allocation9], 4096
        $region64: #{feed_forward.1} parent=47 // pred_fallthru
          _
        %s315 = sand.u32 %s34, 1
        %s316 = scalar_lea.sflag [#allocation3], %s315
        %s317 = sand.u32 %s34, 1
        %s318 = smul.addr %s317, 128
        %s319 = scalar_lea.vmem [#allocation2], %s318
        %p320 = pneg %p47
        %p321 = pneg %p44
        %p322 = pneg %p68
        %p323 = pneg %p65
        %p324 = pneg %p89
        %p325 = pneg %p86
        %p326 = pneg %p110
        %p327 = pneg %p107
        %p328 = pneg %p131
        %p329 = pneg %p128
        %p330 = pneg %p152
        %p331 = pneg %p149
        %p332 = pneg %p173
        %p333 = pneg %p170
        %p334 = pneg %p199
        %p335 = pneg %p196
        %s336 = sand.u32 %s186, 1
        %s337 = scalar_lea.sflag [#allocation4], %s336
        %s338 = sand.u32 %s186, 1
        %s339 = smul.addr %s338, 128
        %s340 = scalar_lea.vmem [#allocation10], %s339
        %s341 = smul.u32 16, %s26
        %s342 = smul.u32 16, %s26
        %v344 = vld [vmem:[%s298] sm:$0xff]
        %v345 = vld [vmem:[%s298 + $0x8] sm:$0xff]
        %v346 = vld [vmem:[%s298 + $0x10] sm:$0xff]
        %v347 = vld [vmem:[%s298 + $0x18] sm:$0xff]
        %v348 = vld [vmem:[%s298 + $0x20] sm:$0xff]
        %v349 = vld [vmem:[%s298 + $0x28] sm:$0xff]
        %v350 = vld [vmem:[%s298 + $0x30] sm:$0xff]
        %v351 = vld [vmem:[%s298 + $0x38] sm:$0xff]
        %v352 = vld [vmem:[%s298 + $0x40] sm:$0xff]
        %v353 = vld [vmem:[%s298 + $0x48] sm:$0xff]
        %v354 = vld [vmem:[%s298 + $0x50] sm:$0xff]
        %v355 = vld [vmem:[%s298 + $0x58] sm:$0xff]
        %v356 = vld [vmem:[%s298 + $0x60] sm:$0xff]
        %v357 = vld [vmem:[%s298 + $0x68] sm:$0xff]
        %v358 = vld [vmem:[%s298 + $0x70] sm:$0xff]
        %v359 = vld [vmem:[%s298 + $0x78] sm:$0xff]
        %v360 = vpack.c.bf16 %v345, %v344
        %v361 = vpack.c.bf16 %v347, %v346
        %v362 = vpack.c.bf16 %v349, %v348
        %v363 = vpack.c.bf16 %v351, %v350
        %v364 = vpack.c.bf16 %v353, %v352
        %v365 = vpack.c.bf16 %v355, %v354
        %v366 = vpack.c.bf16 %v357, %v356
        %v367 = vpack.c.bf16 %v359, %v358
        %v368 = vld [vmem:[#allocation5] sm:$0xff]
        %v369 = vld [vmem:[#allocation5 + $0x8] sm:$0xff]
        %v370 = vld [vmem:[#allocation5 + $0x10] sm:$0xff]
        %v371 = vld [vmem:[#allocation5 + $0x18] sm:$0xff]
        %v372 = vld [vmem:[#allocation5 + $0x20] sm:$0xff]
        %v373 = vld [vmem:[#allocation5 + $0x28] sm:$0xff]
        %v374 = vld [vmem:[#allocation5 + $0x30] sm:$0xff]
        %v375 = vld [vmem:[#allocation5 + $0x38] sm:$0xff]
        %v376 = vld [vmem:[#allocation5 + $0x40] sm:$0xff]
        %v377 = vld [vmem:[#allocation5 + $0x48] sm:$0xff]
        %v378 = vld [vmem:[#allocation5 + $0x50] sm:$0xff]
        %v379 = vld [vmem:[#allocation5 + $0x58] sm:$0xff]
        %v380 = vld [vmem:[#allocation5 + $0x60] sm:$0xff]
        %v381 = vld [vmem:[#allocation5 + $0x68] sm:$0xff]
        %v382 = vld [vmem:[#allocation5 + $0x70] sm:$0xff]
        %v383 = vld [vmem:[#allocation5 + $0x78] sm:$0xff]
        %v384 = vld [vmem:[#allocation5 + $0x80] sm:$0xff]
        %v385 = vld [vmem:[#allocation5 + $0x88] sm:$0xff]
        %v386 = vld [vmem:[#allocation5 + $0x90] sm:$0xff]
        %v387 = vld [vmem:[#allocation5 + $0x98] sm:$0xff]
        %v388 = vld [vmem:[#allocation5 + $0xa0] sm:$0xff]
        %v389 = vld [vmem:[#allocation5 + $0xa8] sm:$0xff]
        %v390 = vld [vmem:[#allocation5 + $0xb0] sm:$0xff]
        %v391 = vld [vmem:[#allocation5 + $0xb8] sm:$0xff]
        %v392 = vld [vmem:[#allocation5 + $0xc0] sm:$0xff]
        %v393 = vld [vmem:[#allocation5 + $0xc8] sm:$0xff]
        %v394 = vld [vmem:[#allocation5 + $0xd0] sm:$0xff]
        %v395 = vld [vmem:[#allocation5 + $0xd8] sm:$0xff]
        %v396 = vld [vmem:[#allocation5 + $0xe0] sm:$0xff]
        %v397 = vld [vmem:[#allocation5 + $0xe8] sm:$0xff]
        %v398 = vld [vmem:[#allocation5 + $0xf0] sm:$0xff]
        %v399 = vld [vmem:[#allocation5 + $0xf8] sm:$0xff]
        %v400 = vld [vmem:[%s2] sm:$0xf]
        %v402 = vlaneseq
        %v403 = vshrl.u32 %v402, 7
        %v404 = vsub.s32 0, %v403
        %v405 = vrot.slane %v400, %v404
        %v406 = vlaneseq
        %v407 = vshrl.u32 %v406, 7
        %v408 = vsub.s32 1, %v407
        %v409 = vrot.slane %v400, %v408
        %v410 = vlaneseq
        %v411 = vshrl.u32 %v410, 7
        %v412 = vsub.s32 2, %v411
        %v413 = vrot.slane %v400, %v412
        %v414 = vlaneseq
        %v415 = vshrl.u32 %v414, 7
        %v416 = vsub.s32 3, %v415
        %v417 = vrot.slane %v400, %v416
        %v454 = vunpack.c.l.b16 %v368
        %v455 = vunpack.c.h.b16 %v368
        %v456 = vunpack.c.l.b16 %v369
        %v457 = vunpack.c.h.b16 %v369
        %v458 = vunpack.c.l.b16 %v370
        %v459 = vunpack.c.h.b16 %v370
        %v460 = vunpack.c.l.b16 %v371
        %v461 = vunpack.c.h.b16 %v371
        %v462 = vunpack.c.l.b16 %v372
        %v463 = vunpack.c.h.b16 %v372
        %v464 = vunpack.c.l.b16 %v373
        %v465 = vunpack.c.h.b16 %v373
        %v466 = vunpack.c.l.b16 %v374
        %v467 = vunpack.c.h.b16 %v374
        %v468 = vunpack.c.l.b16 %v375
        %v469 = vunpack.c.h.b16 %v375
        %v470 = vunpack.c.l.b16 %v376
        %v471 = vunpack.c.h.b16 %v376
        %v472 = vunpack.c.l.b16 %v377
        %v473 = vunpack.c.h.b16 %v377
        %v474 = vunpack.c.l.b16 %v378
        %v475 = vunpack.c.h.b16 %v378
        %v476 = vunpack.c.l.b16 %v379
        %v477 = vunpack.c.h.b16 %v379
        %v478 = vunpack.c.l.b16 %v380
        %v479 = vunpack.c.h.b16 %v380
        %v480 = vunpack.c.l.b16 %v381
        %v481 = vunpack.c.h.b16 %v381
        %v482 = vunpack.c.l.b16 %v382
        %v483 = vunpack.c.h.b16 %v382
        %v484 = vunpack.c.l.b16 %v383
        %v485 = vunpack.c.h.b16 %v383
        %v486 = vunpack.c.l.b16 %v384
        %v487 = vunpack.c.h.b16 %v384
        %v488 = vunpack.c.l.b16 %v385
        %v489 = vunpack.c.h.b16 %v385
        %v490 = vunpack.c.l.b16 %v386
        %v491 = vunpack.c.h.b16 %v386
        %v492 = vunpack.c.l.b16 %v387
        %v493 = vunpack.c.h.b16 %v387
        %v494 = vunpack.c.l.b16 %v388
        %v495 = vunpack.c.h.b16 %v388
        %v496 = vunpack.c.l.b16 %v389
        %v497 = vunpack.c.h.b16 %v389
        %v498 = vunpack.c.l.b16 %v390
        %v499 = vunpack.c.h.b16 %v390
        %v500 = vunpack.c.l.b16 %v391
        %v501 = vunpack.c.h.b16 %v391
        %v502 = vunpack.c.l.b16 %v392
        %v503 = vunpack.c.h.b16 %v392
        %v504 = vunpack.c.l.b16 %v393
        %v505 = vunpack.c.h.b16 %v393
        %v506 = vunpack.c.l.b16 %v394
        %v507 = vunpack.c.h.b16 %v394
        %v508 = vunpack.c.l.b16 %v395
        %v509 = vunpack.c.h.b16 %v395
        %v510 = vunpack.c.l.b16 %v396
        %v511 = vunpack.c.h.b16 %v396
        %v512 = vunpack.c.l.b16 %v397
        %v513 = vunpack.c.h.b16 %v397
        %v514 = vunpack.c.l.b16 %v398
        %v515 = vunpack.c.h.b16 %v398
        %v516 = vunpack.c.l.b16 %v399
        %v517 = vunpack.c.h.b16 %v399
        %v518 = vpack.c.b16 %v458, %v454
        %v519 = vpack.c.b16 %v459, %v455
        %v520 = vpack.c.b16 %v460, %v456
        %v521 = vpack.c.b16 %v461, %v457
        %v522 = vpack.c.b16 %v466, %v462
        %v523 = vpack.c.b16 %v467, %v463
        %v524 = vpack.c.b16 %v468, %v464
        %v525 = vpack.c.b16 %v469, %v465
        %v526 = vpack.c.b16 %v474, %v470
        %v527 = vpack.c.b16 %v475, %v471
        %v528 = vpack.c.b16 %v476, %v472
        %v529 = vpack.c.b16 %v477, %v473
        %v530 = vpack.c.b16 %v482, %v478
        %v531 = vpack.c.b16 %v483, %v479
        %v532 = vpack.c.b16 %v484, %v480
        %v533 = vpack.c.b16 %v485, %v481
        %v534 = vpack.c.b16 %v490, %v486
        %v535 = vpack.c.b16 %v491, %v487
        %v536 = vpack.c.b16 %v492, %v488
        %v537 = vpack.c.b16 %v493, %v489
        %v538 = vpack.c.b16 %v498, %v494
        %v539 = vpack.c.b16 %v499, %v495
        %v540 = vpack.c.b16 %v500, %v496
        %v541 = vpack.c.b16 %v501, %v497
        %v542 = vpack.c.b16 %v506, %v502
        %v543 = vpack.c.b16 %v507, %v503
        %v544 = vpack.c.b16 %v508, %v504
        %v545 = vpack.c.b16 %v509, %v505
        %v546 = vpack.c.b16 %v514, %v510
        %v547 = vpack.c.b16 %v515, %v511
        %v548 = vpack.c.b16 %v516, %v512
        %v549 = vpack.c.b16 %v517, %v513
        %582 = vmatprep.subr.bf16.mxu0 %v519
        %583 = vmatpush1.bf16.msra.mxu0 %v518
        %584 = vmatprep.subr.bf16.mxu0 %v523
        %585 = vmatpush1.bf16.msra.mxu0 %v522
        %586 = vmatprep.subr.bf16.mxu0 %v527
        %587 = vmatpush1.bf16.msra.mxu0 %v526
        %588 = vmatprep.subr.bf16.mxu0 %v531
        %589 = vmatpush1.bf16.msra.mxu0 %v530
        %590 = vmatprep.subr.bf16.mxu0 %v535
        %591 = vmatpush1.bf16.msra.mxu0 %v534
        %592 = vmatprep.subr.bf16.mxu0 %v539
        %593 = vmatpush1.bf16.msra.mxu0 %v538
        %594 = vmatprep.subr.bf16.mxu0 %v543
        %595 = vmatpush1.bf16.msra.mxu0 %v542
        %596 = vmatprep.subr.bf16.mxu0 %v547
        %597 = vmatpush1.bf16.msra.mxu0 %v546
        %598 = vmatprep.subr.bf16.mxu0 0
        %599 = vmatpush1.bf16.msra.mxu0 0
        %600 = vmatprep.subr.bf16.mxu0 0
        %601 = vmatpush1.bf16.msra.mxu0 0
        %602 = vmatprep.subr.bf16.mxu0 0
        %603 = vmatpush1.bf16.msra.mxu0 0
        %604 = vmatprep.subr.bf16.mxu0 0
        %605 = vmatpush1.bf16.msra.mxu0 0
        %606 = vmatprep.subr.bf16.mxu0 0
        %607 = vmatpush1.bf16.msra.mxu0 0
        %608 = vmatprep.subr.bf16.mxu0 0
        %609 = vmatpush1.bf16.msra.mxu0 0
        %610 = vmatprep.subr.bf16.mxu0 0
        %611 = vmatpush1.bf16.msra.mxu0 0
        %612 = vmatprep.subr.bf16.mxu0 0
        %613 = vmatpush1.bf16.msra.mxu0 0
        %614 = vmatprep.mubr.bf16.mxu0 0
        %615 = vmatmul.mubr.bf16.gmra.mrb[0].mxu0 %v360
        %v616 = vpop.f32.mrb[0].mxu0
        %v617 = vadd.f32 %v405, %v616
        %v618 = vpop.f32.mrb[0].mxu0
        %v619 = vadd.f32 %v409, %v618
        %v620 = vpop.f32.mrb[0].mxu0
        %v621 = vadd.f32 %v405, %v620
        %v622 = vpop.f32.mrb[0].mxu0
        %v623 = vadd.f32 %v409, %v622
        %624 = vmatprep.mubr.bf16.mxu0 0
        %625 = vmatmul.mubr.bf16.gmra.mrb[0].mxu0 %v361
        %v626 = vpop.f32.mrb[0].mxu0
        %v627 = vadd.f32 %v405, %v626
        %v628 = vpop.f32.mrb[0].mxu0
        %v629 = vadd.f32 %v409, %v628
        %v630 = vpop.f32.mrb[0].mxu0
        %v631 = vadd.f32 %v405, %v630
        %v632 = vpop.f32.mrb[0].mxu0
        %v633 = vadd.f32 %v409, %v632
        %634 = vmatprep.mubr.bf16.mxu0 0
        %635 = vmatmul.mubr.bf16.gmra.mrb[0].mxu0 %v362
        %v636 = vpop.f32.mrb[0].mxu0
        %v637 = vadd.f32 %v405, %v636
        %v638 = vpop.f32.mrb[0].mxu0
        %v639 = vadd.f32 %v409, %v638
        %v640 = vpop.f32.mrb[0].mxu0
        %v641 = vadd.f32 %v405, %v640
        %v642 = vpop.f32.mrb[0].mxu0
        %v643 = vadd.f32 %v409, %v642
        %644 = vmatprep.mubr.bf16.mxu0 0
        %645 = vmatmul.mubr.bf16.gmra.mrb[0].mxu0 %v363
        %v646 = vpop.f32.mrb[0].mxu0
        %v647 = vadd.f32 %v405, %v646
        %v648 = vpop.f32.mrb[0].mxu0
        %v649 = vadd.f32 %v409, %v648
        %v650 = vpop.f32.mrb[0].mxu0
        %v651 = vadd.f32 %v405, %v650
        %v652 = vpop.f32.mrb[0].mxu0
        %v653 = vadd.f32 %v409, %v652
        %654 = vmatprep.mubr.bf16.mxu0 0
        %655 = vmatmul.mubr.bf16.gmra.mrb[0].mxu0 %v364
        %v656 = vpop.f32.mrb[0].mxu0
        %v657 = vadd.f32 %v405, %v656
        %v658 = vpop.f32.mrb[0].mxu0
        %v659 = vadd.f32 %v409, %v658
        %v660 = vpop.f32.mrb[0].mxu0
        %v661 = vadd.f32 %v405, %v660
        %v662 = vpop.f32.mrb[0].mxu0
        %v663 = vadd.f32 %v409, %v662
        %664 = vmatprep.mubr.bf16.mxu0 0
        %665 = vmatmul.mubr.bf16.gmra.mrb[0].mxu0 %v365
        %v666 = vpop.f32.mrb[0].mxu0
        %v667 = vadd.f32 %v405, %v666
        %v668 = vpop.f32.mrb[0].mxu0
        %v669 = vadd.f32 %v409, %v668
        %v670 = vpop.f32.mrb[0].mxu0
        %v671 = vadd.f32 %v405, %v670
        %v672 = vpop.f32.mrb[0].mxu0
        %v673 = vadd.f32 %v409, %v672
        %674 = vmatprep.mubr.bf16.mxu0 0
        %675 = vmatmul.mubr.bf16.gmra.mrb[0].mxu0 %v366
        %v676 = vpop.f32.mrb[0].mxu0
        %v677 = vadd.f32 %v405, %v676
        %v678 = vpop.f32.mrb[0].mxu0
        %v679 = vadd.f32 %v409, %v678
        %v680 = vpop.f32.mrb[0].mxu0
        %v681 = vadd.f32 %v405, %v680
        %v682 = vpop.f32.mrb[0].mxu0
        %v683 = vadd.f32 %v409, %v682
        %684 = vmatprep.mubr.bf16.mxu0 0
        %685 = vmatmul.mubr.bf16.gmra.mrb[0].mxu0 %v367
        %v686 = vpop.f32.mrb[0].mxu0
        %v687 = vadd.f32 %v405, %v686
        %v688 = vpop.f32.mrb[0].mxu0
        %v689 = vadd.f32 %v409, %v688
        %v690 = vpop.f32.mrb[0].mxu0
        %v691 = vadd.f32 %v405, %v690
        %v692 = vpop.f32.mrb[0].mxu0
        %v693 = vadd.f32 %v409, %v692
        %694 = vdwg.mxu0
        %695 = vmatprep.subr.bf16.mxu0 %v521
        %696 = vmatpush1.bf16.msra.mxu0 %v520
        %697 = vmatprep.subr.bf16.mxu0 %v525
        %698 = vmatpush1.bf16.msra.mxu0 %v524
        %699 = vmatprep.subr.bf16.mxu0 %v529
        %700 = vmatpush1.bf16.msra.mxu0 %v528
        %701 = vmatprep.subr.bf16.mxu0 %v533
        %702 = vmatpush1.bf16.msra.mxu0 %v532
        %703 = vmatprep.subr.bf16.mxu0 %v537
        %704 = vmatpush1.bf16.msra.mxu0 %v536
        %705 = vmatprep.subr.bf16.mxu0 %v541
        %706 = vmatpush1.bf16.msra.mxu0 %v540
        %707 = vmatprep.subr.bf16.mxu0 %v545
        %708 = vmatpush1.bf16.msra.mxu0 %v544
        %709 = vmatprep.subr.bf16.mxu0 %v549
        %710 = vmatpush1.bf16.msra.mxu0 %v548
        %711 = vmatprep.subr.bf16.mxu0 0
        %712 = vmatpush1.bf16.msra.mxu0 0
        %713 = vmatprep.subr.bf16.mxu0 0
        %714 = vmatpush1.bf16.msra.mxu0 0
        %715 = vmatprep.subr.bf16.mxu0 0
        %716 = vmatpush1.bf16.msra.mxu0 0
        %717 = vmatprep.subr.bf16.mxu0 0
        %718 = vmatpush1.bf16.msra.mxu0 0
        %719 = vmatprep.subr.bf16.mxu0 0
        %720 = vmatpush1.bf16.msra.mxu0 0
        %721 = vmatprep.subr.bf16.mxu0 0
        %722 = vmatpush1.bf16.msra.mxu0 0
        %723 = vmatprep.subr.bf16.mxu0 0
        %724 = vmatpush1.bf16.msra.mxu0 0
        %725 = vmatprep.subr.bf16.mxu0 0
        %726 = vmatpush1.bf16.msra.mxu0 0
        %727 = vmatprep.mubr.bf16.mxu0 0
        %728 = vmatmul.mubr.bf16.gmra.mrb[0].mxu0 %v360
        %v729 = vpop.f32.mrb[0].mxu0
        %v730 = vadd.f32 %v413, %v729
        %v731 = vpop.f32.mrb[0].mxu0
        %v732 = vadd.f32 %v417, %v731
        %v733 = vpop.f32.mrb[0].mxu0
        %v734 = vadd.f32 %v413, %v733
        %v735 = vpop.f32.mrb[0].mxu0
        %v736 = vadd.f32 %v417, %v735
        %737 = vmatprep.mubr.bf16.mxu0 0
        %738 = vmatmul.mubr.bf16.gmra.mrb[0].mxu0 %v361
        %v739 = vpop.f32.mrb[0].mxu0
        %v740 = vadd.f32 %v413, %v739
        %v741 = vpop.f32.mrb[0].mxu0
        %v742 = vadd.f32 %v417, %v741
        %v743 = vpop.f32.mrb[0].mxu0
        %v744 = vadd.f32 %v413, %v743
        %v745 = vpop.f32.mrb[0].mxu0
        %v746 = vadd.f32 %v417, %v745
        %747 = vmatprep.mubr.bf16.mxu0 0
        %748 = vmatmul.mubr.bf16.gmra.mrb[0].mxu0 %v362
        %v749 = vpop.f32.mrb[0].mxu0
        %v750 = vadd.f32 %v413, %v749
        %v751 = vpop.f32.mrb[0].mxu0
        %v752 = vadd.f32 %v417, %v751
        %v753 = vpop.f32.mrb[0].mxu0
        %v754 = vadd.f32 %v413, %v753
        %v755 = vpop.f32.mrb[0].mxu0
        %v756 = vadd.f32 %v417, %v755
        %757 = vmatprep.mubr.bf16.mxu0 0
        %758 = vmatmul.mubr.bf16.gmra.mrb[0].mxu0 %v363
        %v759 = vpop.f32.mrb[0].mxu0
        %v760 = vadd.f32 %v413, %v759
        %v761 = vpop.f32.mrb[0].mxu0
        %v762 = vadd.f32 %v417, %v761
        %v763 = vpop.f32.mrb[0].mxu0
        %v764 = vadd.f32 %v413, %v763
        %v765 = vpop.f32.mrb[0].mxu0
        %v766 = vadd.f32 %v417, %v765
        %767 = vmatprep.mubr.bf16.mxu0 0
        %768 = vmatmul.mubr.bf16.gmra.mrb[0].mxu0 %v364
        %v769 = vpop.f32.mrb[0].mxu0
        %v770 = vadd.f32 %v413, %v769
        %v771 = vpop.f32.mrb[0].mxu0
        %v772 = vadd.f32 %v417, %v771
        %v773 = vpop.f32.mrb[0].mxu0
        %v774 = vadd.f32 %v413, %v773
        %v775 = vpop.f32.mrb[0].mxu0
        %v776 = vadd.f32 %v417, %v775
        %777 = vmatprep.mubr.bf16.mxu0 0
        %778 = vmatmul.mubr.bf16.gmra.mrb[0].mxu0 %v365
        %v779 = vpop.f32.mrb[0].mxu0
        %v780 = vadd.f32 %v413, %v779
        %v781 = vpop.f32.mrb[0].mxu0
        %v782 = vadd.f32 %v417, %v781
        %v783 = vpop.f32.mrb[0].mxu0
        %v784 = vadd.f32 %v413, %v783
        %v785 = vpop.f32.mrb[0].mxu0
        %v786 = vadd.f32 %v417, %v785
        %787 = vmatprep.mubr.bf16.mxu0 0
        %788 = vmatmul.mubr.bf16.gmra.mrb[0].mxu0 %v366
        %v789 = vpop.f32.mrb[0].mxu0
        %v790 = vadd.f32 %v413, %v789
        %v791 = vpop.f32.mrb[0].mxu0
        %v792 = vadd.f32 %v417, %v791
        %v793 = vpop.f32.mrb[0].mxu0
        %v794 = vadd.f32 %v413, %v793
        %v795 = vpop.f32.mrb[0].mxu0
        %v796 = vadd.f32 %v417, %v795
        %797 = vmatprep.mubr.bf16.mxu0 0
        %798 = vmatmul.mubr.bf16.gmra.mrb[0].mxu0 %v367
        %v799 = vpop.f32.mrb[0].mxu0
        %v800 = vadd.f32 %v413, %v799
        %v801 = vpop.f32.mrb[0].mxu0
        %v802 = vadd.f32 %v417, %v801
        %v803 = vpop.f32.mrb[0].mxu0
        %v804 = vadd.f32 %v413, %v803
        %v805 = vpop.f32.mrb[0].mxu0
        %v806 = vadd.f32 %v417, %v805
        %807 = vdwg.mxu0
        %v808 = vld [vmem:[#allocation7] sm:$0xff]
        %v809 = vld [vmem:[#allocation7 + $0x8] sm:$0xff]
        %v810 = vld [vmem:[#allocation7 + $0x10] sm:$0xff]
        %v811 = vld [vmem:[#allocation7 + $0x18] sm:$0xff]
        %v812 = vld [vmem:[#allocation7 + $0x20] sm:$0xff]
        %v813 = vld [vmem:[#allocation7 + $0x28] sm:$0xff]
        %v814 = vld [vmem:[#allocation7 + $0x30] sm:$0xff]
        %v815 = vld [vmem:[#allocation7 + $0x38] sm:$0xff]
        %v816 = vld [vmem:[#allocation7 + $0x40] sm:$0xff]
        %v817 = vld [vmem:[#allocation7 + $0x48] sm:$0xff]
        %v818 = vld [vmem:[#allocation7 + $0x50] sm:$0xff]
        %v819 = vld [vmem:[#allocation7 + $0x58] sm:$0xff]
        %v820 = vld [vmem:[#allocation7 + $0x60] sm:$0xff]
        %v821 = vld [vmem:[#allocation7 + $0x68] sm:$0xff]
        %v822 = vld [vmem:[#allocation7 + $0x70] sm:$0xff]
        %v823 = vld [vmem:[#allocation7 + $0x78] sm:$0xff]
        %v824 = vld [vmem:[#allocation7 + $0x80] sm:$0xff]
        %v825 = vld [vmem:[#allocation7 + $0x88] sm:$0xff]
        %v826 = vld [vmem:[#allocation7 + $0x90] sm:$0xff]
        %v827 = vld [vmem:[#allocation7 + $0x98] sm:$0xff]
        %v828 = vld [vmem:[#allocation7 + $0xa0] sm:$0xff]
        %v829 = vld [vmem:[#allocation7 + $0xa8] sm:$0xff]
        %v830 = vld [vmem:[#allocation7 + $0xb0] sm:$0xff]
        %v831 = vld [vmem:[#allocation7 + $0xb8] sm:$0xff]
        %v832 = vld [vmem:[#allocation7 + $0xc0] sm:$0xff]
        %v833 = vld [vmem:[#allocation7 + $0xc8] sm:$0xff]
        %v834 = vld [vmem:[#allocation7 + $0xd0] sm:$0xff]
        %v835 = vld [vmem:[#allocation7 + $0xd8] sm:$0xff]
        %v836 = vld [vmem:[#allocation7 + $0xe0] sm:$0xff]
        %v837 = vld [vmem:[#allocation7 + $0xe8] sm:$0xff]
        %v838 = vld [vmem:[#allocation7 + $0xf0] sm:$0xff]
        %v839 = vld [vmem:[#allocation7 + $0xf8] sm:$0xff]
        %v840 = vld [vmem:[%s4] sm:$0xf]
        %v842 = vlaneseq
        %v843 = vshrl.u32 %v842, 7
        %v844 = vsub.s32 0, %v843
        %v845 = vrot.slane %v840, %v844
        %v846 = vlaneseq
        %v847 = vshrl.u32 %v846, 7
        %v848 = vsub.s32 1, %v847
        %v849 = vrot.slane %v840, %v848
        %v850 = vlaneseq
        %v851 = vshrl.u32 %v850, 7
        %v852 = vsub.s32 2, %v851
        %v853 = vrot.slane %v840, %v852
        %v854 = vlaneseq
        %v855 = vshrl.u32 %v854, 7
        %v856 = vsub.s32 3, %v855
        %v857 = vrot.slane %v840, %v856
        %v894 = vunpack.c.l.b16 %v808
        %v895 = vunpack.c.h.b16 %v808
        %v896 = vunpack.c.l.b16 %v809
        %v897 = vunpack.c.h.b16 %v809
        %v898 = vunpack.c.l.b16 %v810
        %v899 = vunpack.c.h.b16 %v810
        %v900 = vunpack.c.l.b16 %v811
        %v901 = vunpack.c.h.b16 %v811
        %v902 = vunpack.c.l.b16 %v812
        %v903 = vunpack.c.h.b16 %v812
        %v904 = vunpack.c.l.b16 %v813
        %v905 = vunpack.c.h.b16 %v813
        %v906 = vunpack.c.l.b16 %v814
        %v907 = vunpack.c.h.b16 %v814
        %v908 = vunpack.c.l.b16 %v815
        %v909 = vunpack.c.h.b16 %v815
        %v910 = vunpack.c.l.b16 %v816
        %v911 = vunpack.c.h.b16 %v816
        %v912 = vunpack.c.l.b16 %v817
        %v913 = vunpack.c.h.b16 %v817
        %v914 = vunpack.c.l.b16 %v818
        %v915 = vunpack.c.h.b16 %v818
        %v916 = vunpack.c.l.b16 %v819
        %v917 = vunpack.c.h.b16 %v819
        %v918 = vunpack.c.l.b16 %v820
        %v919 = vunpack.c.h.b16 %v820
        %v920 = vunpack.c.l.b16 %v821
        %v921 = vunpack.c.h.b16 %v821
        %v922 = vunpack.c.l.b16 %v822
        %v923 = vunpack.c.h.b16 %v822
        %v924 = vunpack.c.l.b16 %v823
        %v925 = vunpack.c.h.b16 %v823
        %v926 = vunpack.c.l.b16 %v824
        %v927 = vunpack.c.h.b16 %v824
        %v928 = vunpack.c.l.b16 %v825
        %v929 = vunpack.c.h.b16 %v825
        %v930 = vunpack.c.l.b16 %v826
        %v931 = vunpack.c.h.b16 %v826
        %v932 = vunpack.c.l.b16 %v827
        %v933 = vunpack.c.h.b16 %v827
        %v934 = vunpack.c.l.b16 %v828
        %v935 = vunpack.c.h.b16 %v828
        %v936 = vunpack.c.l.b16 %v829
        %v937 = vunpack.c.h.b16 %v829
        %v938 = vunpack.c.l.b16 %v830
        %v939 = vunpack.c.h.b16 %v830
        %v940 = vunpack.c.l.b16 %v831
        %v941 = vunpack.c.h.b16 %v831
        %v942 = vunpack.c.l.b16 %v832
        %v943 = vunpack.c.h.b16 %v832
        %v944 = vunpack.c.l.b16 %v833
        %v945 = vunpack.c.h.b16 %v833
        %v946 = vunpack.c.l.b16 %v834
        %v947 = vunpack.c.h.b16 %v834
        %v948 = vunpack.c.l.b16 %v835
        %v949 = vunpack.c.h.b16 %v835
        %v950 = vunpack.c.l.b16 %v836
        %v951 = vunpack.c.h.b16 %v836
        %v952 = vunpack.c.l.b16 %v837
        %v953 = vunpack.c.h.b16 %v837
        %v954 = vunpack.c.l.b16 %v838
        %v955 = vunpack.c.h.b16 %v838
        %v956 = vunpack.c.l.b16 %v839
        %v957 = vunpack.c.h.b16 %v839
        %v958 = vpack.c.b16 %v898, %v894
        %v959 = vpack.c.b16 %v899, %v895
        %v960 = vpack.c.b16 %v900, %v896
        %v961 = vpack.c.b16 %v901, %v897
        %v962 = vpack.c.b16 %v906, %v902
        %v963 = vpack.c.b16 %v907, %v903
        %v964 = vpack.c.b16 %v908, %v904
        %v965 = vpack.c.b16 %v909, %v905
        %v966 = vpack.c.b16 %v914, %v910
        %v967 = vpack.c.b16 %v915, %v911
        %v968 = vpack.c.b16 %v916, %v912
        %v969 = vpack.c.b16 %v917, %v913
        %v970 = vpack.c.b16 %v922, %v918
        %v971 = vpack.c.b16 %v923, %v919
        %v972 = vpack.c.b16 %v924, %v920
        %v973 = vpack.c.b16 %v925, %v921
        %v974 = vpack.c.b16 %v930, %v926
        %v975 = vpack.c.b16 %v931, %v927
        %v976 = vpack.c.b16 %v932, %v928
        %v977 = vpack.c.b16 %v933, %v929
        %v978 = vpack.c.b16 %v938, %v934
        %v979 = vpack.c.b16 %v939, %v935
        %v980 = vpack.c.b16 %v940, %v936
        %v981 = vpack.c.b16 %v941, %v937
        %v982 = vpack.c.b16 %v946, %v942
        %v983 = vpack.c.b16 %v947, %v943
        %v984 = vpack.c.b16 %v948, %v944
        %v985 = vpack.c.b16 %v949, %v945
        %v986 = vpack.c.b16 %v954, %v950
        %v987 = vpack.c.b16 %v955, %v951
        %v988 = vpack.c.b16 %v956, %v952
        %v989 = vpack.c.b16 %v957, %v953
        %1022 = vmatprep.subr.bf16.mxu0 %v959
        %1023 = vmatpush1.bf16.msra.mxu0 %v958
        %1024 = vmatprep.subr.bf16.mxu0 %v963
        %1025 = vmatpush1.bf16.msra.mxu0 %v962
        %1026 = vmatprep.subr.bf16.mxu0 %v967
        %1027 = vmatpush1.bf16.msra.mxu0 %v966
        %1028 = vmatprep.subr.bf16.mxu0 %v971
        %1029 = vmatpush1.bf16.msra.mxu0 %v970
        %1030 = vmatprep.subr.bf16.mxu0 %v975
        %1031 = vmatpush1.bf16.msra.mxu0 %v974
        %1032 = vmatprep.subr.bf16.mxu0 %v979
        %1033 = vmatpush1.bf16.msra.mxu0 %v978
        %1034 = vmatprep.subr.bf16.mxu0 %v983
        %1035 = vmatpush1.bf16.msra.mxu0 %v982
        %1036 = vmatprep.subr.bf16.mxu0 %v987
        %1037 = vmatpush1.bf16.msra.mxu0 %v986
        %1038 = vmatprep.subr.bf16.mxu0 0
        %1039 = vmatpush1.bf16.msra.mxu0 0
        %1040 = vmatprep.subr.bf16.mxu0 0
        %1041 = vmatpush1.bf16.msra.mxu0 0
        %1042 = vmatprep.subr.bf16.mxu0 0
        %1043 = vmatpush1.bf16.msra.mxu0 0
        %1044 = vmatprep.subr.bf16.mxu0 0
        %1045 = vmatpush1.bf16.msra.mxu0 0
        %1046 = vmatprep.subr.bf16.mxu0 0
        %1047 = vmatpush1.bf16.msra.mxu0 0
        %1048 = vmatprep.subr.bf16.mxu0 0
        %1049 = vmatpush1.bf16.msra.mxu0 0
        %1050 = vmatprep.subr.bf16.mxu0 0
        %1051 = vmatpush1.bf16.msra.mxu0 0
        %1052 = vmatprep.subr.bf16.mxu0 0
        %1053 = vmatpush1.bf16.msra.mxu0 0
        %1054 = vmatprep.mubr.bf16.mxu0 0
        %1055 = vmatmul.mubr.bf16.gmra.mrb[0].mxu0 %v360
        %v1056 = vpop.f32.mrb[0].mxu0
        %v1057 = vadd.f32 %v845, %v1056
        %v1058 = vpop.f32.mrb[0].mxu0
        %v1059 = vadd.f32 %v849, %v1058
        %v1060 = vpop.f32.mrb[0].mxu0
        %v1061 = vadd.f32 %v845, %v1060
        %v1062 = vpop.f32.mrb[0].mxu0
        %v1063 = vadd.f32 %v849, %v1062
        %1064 = vmatprep.mubr.bf16.mxu0 0
        %1065 = vmatmul.mubr.bf16.gmra.mrb[0].mxu0 %v361
        %v1066 = vpop.f32.mrb[0].mxu0
        %v1067 = vadd.f32 %v845, %v1066
        %v1068 = vpop.f32.mrb[0].mxu0
        %v1069 = vadd.f32 %v849, %v1068
        %v1070 = vpop.f32.mrb[0].mxu0
        %v1071 = vadd.f32 %v845, %v1070
        %v1072 = vpop.f32.mrb[0].mxu0
        %v1073 = vadd.f32 %v849, %v1072
        %1074 = vmatprep.mubr.bf16.mxu0 0
        %1075 = vmatmul.mubr.bf16.gmra.mrb[0].mxu0 %v362
        %v1076 = vpop.f32.mrb[0].mxu0
        %v1077 = vadd.f32 %v845, %v1076
        %v1078 = vpop.f32.mrb[0].mxu0
        %v1079 = vadd.f32 %v849, %v1078
        %v1080 = vpop.f32.mrb[0].mxu0
        %v1081 = vadd.f32 %v845, %v1080
        %v1082 = vpop.f32.mrb[0].mxu0
        %v1083 = vadd.f32 %v849, %v1082
        %1084 = vmatprep.mubr.bf16.mxu0 0
        %1085 = vmatmul.mubr.bf16.gmra.mrb[0].mxu0 %v363
        %v1086 = vpop.f32.mrb[0].mxu0
        %v1087 = vadd.f32 %v845, %v1086
        %v1088 = vpop.f32.mrb[0].mxu0
        %v1089 = vadd.f32 %v849, %v1088
        %v1090 = vpop.f32.mrb[0].mxu0
        %v1091 = vadd.f32 %v845, %v1090
        %v1092 = vpop.f32.mrb[0].mxu0
        %v1093 = vadd.f32 %v849, %v1092
        %1094 = vmatprep.mubr.bf16.mxu0 0
        %1095 = vmatmul.mubr.bf16.gmra.mrb[0].mxu0 %v364
        %v1096 = vpop.f32.mrb[0].mxu0
        %v1097 = vadd.f32 %v845, %v1096
        %v1098 = vpop.f32.mrb[0].mxu0
        %v1099 = vadd.f32 %v849, %v1098
        %v1100 = vpop.f32.mrb[0].mxu0
        %v1101 = vadd.f32 %v845, %v1100
        %v1102 = vpop.f32.mrb[0].mxu0
        %v1103 = vadd.f32 %v849, %v1102
        %1104 = vmatprep.mubr.bf16.mxu0 0
        %1105 = vmatmul.mubr.bf16.gmra.mrb[0].mxu0 %v365
        %v1106 = vpop.f32.mrb[0].mxu0
        %v1107 = vadd.f32 %v845, %v1106
        %v1108 = vpop.f32.mrb[0].mxu0
        %v1109 = vadd.f32 %v849, %v1108
        %v1110 = vpop.f32.mrb[0].mxu0
        %v1111 = vadd.f32 %v845, %v1110
        %v1112 = vpop.f32.mrb[0].mxu0
        %v1113 = vadd.f32 %v849, %v1112
        %1114 = vmatprep.mubr.bf16.mxu0 0
        %1115 = vmatmul.mubr.bf16.gmra.mrb[0].mxu0 %v366
        %v1116 = vpop.f32.mrb[0].mxu0
        %v1117 = vadd.f32 %v845, %v1116
        %v1118 = vpop.f32.mrb[0].mxu0
        %v1119 = vadd.f32 %v849, %v1118
        %v1120 = vpop.f32.mrb[0].mxu0
        %v1121 = vadd.f32 %v845, %v1120
        %v1122 = vpop.f32.mrb[0].mxu0
        %v1123 = vadd.f32 %v849, %v1122
        %1124 = vmatprep.mubr.bf16.mxu0 0
        %1125 = vmatmul.mubr.bf16.gmra.mrb[0].mxu0 %v367
        %v1126 = vpop.f32.mrb[0].mxu0
        %v1127 = vadd.f32 %v845, %v1126
        %v1128 = vpop.f32.mrb[0].mxu0
        %v1129 = vadd.f32 %v849, %v1128
        %v1130 = vpop.f32.mrb[0].mxu0
        %v1131 = vadd.f32 %v845, %v1130
        %v1132 = vpop.f32.mrb[0].mxu0
        %v1133 = vadd.f32 %v849, %v1132
        %1134 = vdwg.mxu0
        %1135 = vmatprep.subr.bf16.mxu0 %v961
        %1136 = vmatpush1.bf16.msra.mxu0 %v960
        %1137 = vmatprep.subr.bf16.mxu0 %v965
        %1138 = vmatpush1.bf16.msra.mxu0 %v964
        %1139 = vmatprep.subr.bf16.mxu0 %v969
        %1140 = vmatpush1.bf16.msra.mxu0 %v968
        %1141 = vmatprep.subr.bf16.mxu0 %v973
        %1142 = vmatpush1.bf16.msra.mxu0 %v972
        %1143 = vmatprep.subr.bf16.mxu0 %v977
        %1144 = vmatpush1.bf16.msra.mxu0 %v976
        %1145 = vmatprep.subr.bf16.mxu0 %v981
        %1146 = vmatpush1.bf16.msra.mxu0 %v980
        %1147 = vmatprep.subr.bf16.mxu0 %v985
        %1148 = vmatpush1.bf16.msra.mxu0 %v984
        %1149 = vmatprep.subr.bf16.mxu0 %v989
        %1150 = vmatpush1.bf16.msra.mxu0 %v988
        %1151 = vmatprep.subr.bf16.mxu0 0
        %1152 = vmatpush1.bf16.msra.mxu0 0
        %1153 = vmatprep.subr.bf16.mxu0 0
        %1154 = vmatpush1.bf16.msra.mxu0 0
        %1155 = vmatprep.subr.bf16.mxu0 0
        %1156 = vmatpush1.bf16.msra.mxu0 0
        %1157 = vmatprep.subr.bf16.mxu0 0
        %1158 = vmatpush1.bf16.msra.mxu0 0
        %1159 = vmatprep.subr.bf16.mxu0 0
        %1160 = vmatpush1.bf16.msra.mxu0 0
        %1161 = vmatprep.subr.bf16.mxu0 0
        %1162 = vmatpush1.bf16.msra.mxu0 0
        %1163 = vmatprep.subr.bf16.mxu0 0
        %1164 = vmatpush1.bf16.msra.mxu0 0
        %1165 = vmatprep.subr.bf16.mxu0 0
        %1166 = vmatpush1.bf16.msra.mxu0 0
        %1167 = vmatprep.mubr.bf16.mxu0 0
        %1168 = vmatmul.mubr.bf16.gmra.mrb[0].mxu0 %v360
        %v1169 = vpop.f32.mrb[0].mxu0
        %v1170 = vadd.f32 %v853, %v1169
        %v1171 = vpop.f32.mrb[0].mxu0
        %v1172 = vadd.f32 %v857, %v1171
        %v1173 = vpop.f32.mrb[0].mxu0
        %v1174 = vadd.f32 %v853, %v1173
        %v1175 = vpop.f32.mrb[0].mxu0
        %v1176 = vadd.f32 %v857, %v1175
        %1177 = vmatprep.mubr.bf16.mxu0 0
        %1178 = vmatmul.mubr.bf16.gmra.mrb[0].mxu0 %v361
        %v1179 = vpop.f32.mrb[0].mxu0
        %v1180 = vadd.f32 %v853, %v1179
        %v1181 = vpop.f32.mrb[0].mxu0
        %v1182 = vadd.f32 %v857, %v1181
        %v1183 = vpop.f32.mrb[0].mxu0
        %v1184 = vadd.f32 %v853, %v1183
        %v1185 = vpop.f32.mrb[0].mxu0
        %v1186 = vadd.f32 %v857, %v1185
        %1187 = vmatprep.mubr.bf16.mxu0 0
        %1188 = vmatmul.mubr.bf16.gmra.mrb[0].mxu0 %v362
        %v1189 = vpop.f32.mrb[0].mxu0
        %v1190 = vadd.f32 %v853, %v1189
        %v1191 = vpop.f32.mrb[0].mxu0
        %v1192 = vadd.f32 %v857, %v1191
        %v1193 = vpop.f32.mrb[0].mxu0
        %v1194 = vadd.f32 %v853, %v1193
        %v1195 = vpop.f32.mrb[0].mxu0
        %v1196 = vadd.f32 %v857, %v1195
        %1197 = vmatprep.mubr.bf16.mxu0 0
        %1198 = vmatmul.mubr.bf16.gmra.mrb[0].mxu0 %v363
        %v1199 = vpop.f32.mrb[0].mxu0
        %v1200 = vadd.f32 %v853, %v1199
        %v1201 = vpop.f32.mrb[0].mxu0
        %v1202 = vadd.f32 %v857, %v1201
        %v1203 = vpop.f32.mrb[0].mxu0
        %v1204 = vadd.f32 %v853, %v1203
        %v1205 = vpop.f32.mrb[0].mxu0
        %v1206 = vadd.f32 %v857, %v1205
        %1207 = vmatprep.mubr.bf16.mxu0 0
        %1208 = vmatmul.mubr.bf16.gmra.mrb[0].mxu0 %v364
        %v1209 = vpop.f32.mrb[0].mxu0
        %v1210 = vadd.f32 %v853, %v1209
        %v1211 = vpop.f32.mrb[0].mxu0
        %v1212 = vadd.f32 %v857, %v1211
        %v1213 = vpop.f32.mrb[0].mxu0
        %v1214 = vadd.f32 %v853, %v1213
        %v1215 = vpop.f32.mrb[0].mxu0
        %v1216 = vadd.f32 %v857, %v1215
        %1217 = vmatprep.mubr.bf16.mxu0 0
        %1218 = vmatmul.mubr.bf16.gmra.mrb[0].mxu0 %v365
        %v1219 = vpop.f32.mrb[0].mxu0
        %v1220 = vadd.f32 %v853, %v1219
        %v1221 = vpop.f32.mrb[0].mxu0
        %v1222 = vadd.f32 %v857, %v1221
        %v1223 = vpop.f32.mrb[0].mxu0
        %v1224 = vadd.f32 %v853, %v1223
        %v1225 = vpop.f32.mrb[0].mxu0
        %v1226 = vadd.f32 %v857, %v1225
        %1227 = vmatprep.mubr.bf16.mxu0 0
        %1228 = vmatmul.mubr.bf16.gmra.mrb[0].mxu0 %v366
        %v1229 = vpop.f32.mrb[0].mxu0
        %v1230 = vadd.f32 %v853, %v1229
        %v1231 = vpop.f32.mrb[0].mxu0
        %v1232 = vadd.f32 %v857, %v1231
        %v1233 = vpop.f32.mrb[0].mxu0
        %v1234 = vadd.f32 %v853, %v1233
        %v1235 = vpop.f32.mrb[0].mxu0
        %v1236 = vadd.f32 %v857, %v1235
        %1237 = vmatprep.mubr.bf16.mxu0 0
        %1238 = vmatmul.mubr.bf16.gmra.mrb[0].mxu0 %v367
        %v1239 = vpop.f32.mrb[0].mxu0
        %v1240 = vadd.f32 %v853, %v1239
        %v1241 = vpop.f32.mrb[0].mxu0
        %v1242 = vadd.f32 %v857, %v1241
        %v1243 = vpop.f32.mrb[0].mxu0
        %v1244 = vadd.f32 %v853, %v1243
        %v1245 = vpop.f32.mrb[0].mxu0
        %v1246 = vadd.f32 %v857, %v1245
        %1247 = vdwg.mxu0
        %v1248 = vmul.f32 %v1057, 0.5
        %v1249 = vmul.f32 %v1059, 0.5
        %v1250 = vmul.f32 %v1170, 0.5
        %v1251 = vmul.f32 %v1172, 0.5
        %v1252 = vmul.f32 %v1061, 0.5
        %v1253 = vmul.f32 %v1063, 0.5
        %v1254 = vmul.f32 %v1174, 0.5
        %v1255 = vmul.f32 %v1176, 0.5
        %v1256 = vmul.f32 %v1067, 0.5
        %v1257 = vmul.f32 %v1069, 0.5
        %v1258 = vmul.f32 %v1180, 0.5
        %v1259 = vmul.f32 %v1182, 0.5
        %v1260 = vmul.f32 %v1071, 0.5
        %v1261 = vmul.f32 %v1073, 0.5
        %v1262 = vmul.f32 %v1184, 0.5
        %v1263 = vmul.f32 %v1186, 0.5
        %v1264 = vmul.f32 %v1077, 0.5
        %v1265 = vmul.f32 %v1079, 0.5
        %v1266 = vmul.f32 %v1190, 0.5
        %v1267 = vmul.f32 %v1192, 0.5
        %v1268 = vmul.f32 %v1081, 0.5
        %v1269 = vmul.f32 %v1083, 0.5
        %v1270 = vmul.f32 %v1194, 0.5
        %v1271 = vmul.f32 %v1196, 0.5
        %v1272 = vmul.f32 %v1087, 0.5
        %v1273 = vmul.f32 %v1089, 0.5
        %v1274 = vmul.f32 %v1200, 0.5
        %v1275 = vmul.f32 %v1202, 0.5
        %v1276 = vmul.f32 %v1091, 0.5
        %v1277 = vmul.f32 %v1093, 0.5
        %v1278 = vmul.f32 %v1204, 0.5
        %v1279 = vmul.f32 %v1206, 0.5
        %v1280 = vmul.f32 %v1097, 0.5
        %v1281 = vmul.f32 %v1099, 0.5
        %v1282 = vmul.f32 %v1210, 0.5
        %v1283 = vmul.f32 %v1212, 0.5
        %v1284 = vmul.f32 %v1101, 0.5
        %v1285 = vmul.f32 %v1103, 0.5
        %v1286 = vmul.f32 %v1214, 0.5
        %v1287 = vmul.f32 %v1216, 0.5
        %v1288 = vmul.f32 %v1107, 0.5
        %v1289 = vmul.f32 %v1109, 0.5
        %v1290 = vmul.f32 %v1220, 0.5
        %v1291 = vmul.f32 %v1222, 0.5
        %v1292 = vmul.f32 %v1111, 0.5
        %v1293 = vmul.f32 %v1113, 0.5
        %v1294 = vmul.f32 %v1224, 0.5
        %v1295 = vmul.f32 %v1226, 0.5
        %v1296 = vmul.f32 %v1117, 0.5
        %v1297 = vmul.f32 %v1119, 0.5
        %v1298 = vmul.f32 %v1230, 0.5
        %v1299 = vmul.f32 %v1232, 0.5
        %v1300 = vmul.f32 %v1121, 0.5
        %v1301 = vmul.f32 %v1123, 0.5
        %v1302 = vmul.f32 %v1234, 0.5
        %v1303 = vmul.f32 %v1236, 0.5
        %v1304 = vmul.f32 %v1127, 0.5
        %v1305 = vmul.f32 %v1129, 0.5
        %v1306 = vmul.f32 %v1240, 0.5
        %v1307 = vmul.f32 %v1242, 0.5
        %v1308 = vmul.f32 %v1131, 0.5
        %v1309 = vmul.f32 %v1133, 0.5
        %v1310 = vmul.f32 %v1244, 0.5
        %v1311 = vmul.f32 %v1246, 0.5
        %v1312 = vmul.f32 %v1057, 0.70710677
        %v1313 = vmul.f32 %v1059, 0.70710677
        %v1314 = vmul.f32 %v1170, 0.70710677
        %v1315 = vmul.f32 %v1172, 0.70710677
        %v1316 = vmul.f32 %v1061, 0.70710677
        %v1317 = vmul.f32 %v1063, 0.70710677
        %v1318 = vmul.f32 %v1174, 0.70710677
        %v1319 = vmul.f32 %v1176, 0.70710677
        %v1320 = vmul.f32 %v1067, 0.70710677
        %v1321 = vmul.f32 %v1069, 0.70710677
        %v1322 = vmul.f32 %v1180, 0.70710677
        %v1323 = vmul.f32 %v1182, 0.70710677
        %v1324 = vmul.f32 %v1071, 0.70710677
        %v1325 = vmul.f32 %v1073, 0.70710677
        %v1326 = vmul.f32 %v1184, 0.70710677
        %v1327 = vmul.f32 %v1186, 0.70710677
        %v1328 = vmul.f32 %v1077, 0.70710677
        %v1329 = vmul.f32 %v1079, 0.70710677
        %v1330 = vmul.f32 %v1190, 0.70710677
        %v1331 = vmul.f32 %v1192, 0.70710677
        %v1332 = vmul.f32 %v1081, 0.70710677
        %v1333 = vmul.f32 %v1083, 0.70710677
        %v1334 = vmul.f32 %v1194, 0.70710677
        %v1335 = vmul.f32 %v1196, 0.70710677
        %v1336 = vmul.f32 %v1087, 0.70710677
        %v1337 = vmul.f32 %v1089, 0.70710677
        %v1338 = vmul.f32 %v1200, 0.70710677
        %v1339 = vmul.f32 %v1202, 0.70710677
        %v1340 = vmul.f32 %v1091, 0.70710677
        %v1341 = vmul.f32 %v1093, 0.70710677
        %v1342 = vmul.f32 %v1204, 0.70710677
        %v1343 = vmul.f32 %v1206, 0.70710677
        %v1344 = vmul.f32 %v1097, 0.70710677
        %v1345 = vmul.f32 %v1099, 0.70710677
        %v1346 = vmul.f32 %v1210, 0.70710677
        %v1347 = vmul.f32 %v1212, 0.70710677
        %v1348 = vmul.f32 %v1101, 0.70710677
        %v1349 = vmul.f32 %v1103, 0.70710677
        %v1350 = vmul.f32 %v1214, 0.70710677
        %v1351 = vmul.f32 %v1216, 0.70710677
        %v1352 = vmul.f32 %v1107, 0.70710677
        %v1353 = vmul.f32 %v1109, 0.70710677
        %v1354 = vmul.f32 %v1220, 0.70710677
        %v1355 = vmul.f32 %v1222, 0.70710677
        %v1356 = vmul.f32 %v1111, 0.70710677
        %v1357 = vmul.f32 %v1113, 0.70710677
        %v1358 = vmul.f32 %v1224, 0.70710677
        %v1359 = vmul.f32 %v1226, 0.70710677
        %v1360 = vmul.f32 %v1117, 0.70710677
        %v1361 = vmul.f32 %v1119, 0.70710677
        %v1362 = vmul.f32 %v1230, 0.70710677
        %v1363 = vmul.f32 %v1232, 0.70710677
        %v1364 = vmul.f32 %v1121, 0.70710677
        %v1365 = vmul.f32 %v1123, 0.70710677
        %v1366 = vmul.f32 %v1234, 0.70710677
        %v1367 = vmul.f32 %v1236, 0.70710677
        %v1368 = vmul.f32 %v1127, 0.70710677
        %v1369 = vmul.f32 %v1129, 0.70710677
        %v1370 = vmul.f32 %v1240, 0.70710677
        %v1371 = vmul.f32 %v1242, 0.70710677
        %v1372 = vmul.f32 %v1131, 0.70710677
        %v1373 = vmul.f32 %v1133, 0.70710677
        %v1374 = vmul.f32 %v1244, 0.70710677
        %v1375 = vmul.f32 %v1246, 0.70710677
        %v1376 = verf.f32.pop %v1312
        %v1377 = verf.f32.pop %v1313
        %v1378 = verf.f32.pop %v1314
        %v1379 = verf.f32.pop %v1315
        %v1380 = verf.f32.pop %v1316
        %v1381 = verf.f32.pop %v1317
        %v1382 = verf.f32.pop %v1318
        %v1383 = verf.f32.pop %v1319
        %v1384 = verf.f32.pop %v1320
        %v1385 = verf.f32.pop %v1321
        %v1386 = verf.f32.pop %v1322
        %v1387 = verf.f32.pop %v1323
        %v1388 = verf.f32.pop %v1324
        %v1389 = verf.f32.pop %v1325
        %v1390 = verf.f32.pop %v1326
        %v1391 = verf.f32.pop %v1327
        %v1392 = verf.f32.pop %v1328
        %v1393 = verf.f32.pop %v1329
        %v1394 = verf.f32.pop %v1330
        %v1395 = verf.f32.pop %v1331
        %v1396 = verf.f32.pop %v1332
        %v1397 = verf.f32.pop %v1333
        %v1398 = verf.f32.pop %v1334
        %v1399 = verf.f32.pop %v1335
        %v1400 = verf.f32.pop %v1336
        %v1401 = verf.f32.pop %v1337
        %v1402 = verf.f32.pop %v1338
        %v1403 = verf.f32.pop %v1339
        %v1404 = verf.f32.pop %v1340
        %v1405 = verf.f32.pop %v1341
        %v1406 = verf.f32.pop %v1342
        %v1407 = verf.f32.pop %v1343
        %v1408 = verf.f32.pop %v1344
        %v1409 = verf.f32.pop %v1345
        %v1410 = verf.f32.pop %v1346
        %v1411 = verf.f32.pop %v1347
        %v1412 = verf.f32.pop %v1348
        %v1413 = verf.f32.pop %v1349
        %v1414 = verf.f32.pop %v1350
        %v1415 = verf.f32.pop %v1351
        %v1416 = verf.f32.pop %v1352
        %v1417 = verf.f32.pop %v1353
        %v1418 = verf.f32.pop %v1354
        %v1419 = verf.f32.pop %v1355
        %v1420 = verf.f32.pop %v1356
        %v1421 = verf.f32.pop %v1357
        %v1422 = verf.f32.pop %v1358
        %v1423 = verf.f32.pop %v1359
        %v1424 = verf.f32.pop %v1360
        %v1425 = verf.f32.pop %v1361
        %v1426 = verf.f32.pop %v1362
        %v1427 = verf.f32.pop %v1363
        %v1428 = verf.f32.pop %v1364
        %v1429 = verf.f32.pop %v1365
        %v1430 = verf.f32.pop %v1366
        %v1431 = verf.f32.pop %v1367
        %v1432 = verf.f32.pop %v1368
        %v1433 = verf.f32.pop %v1369
        %v1434 = verf.f32.pop %v1370
        %v1435 = verf.f32.pop %v1371
        %v1436 = verf.f32.pop %v1372
        %v1437 = verf.f32.pop %v1373
        %v1438 = verf.f32.pop %v1374
        %v1439 = verf.f32.pop %v1375
        %v1440 = vadd.f32 %v1376, 1.0
        %v1441 = vadd.f32 %v1377, 1.0
        %v1442 = vadd.f32 %v1378, 1.0
        %v1443 = vadd.f32 %v1379, 1.0
        %v1444 = vadd.f32 %v1380, 1.0
        %v1445 = vadd.f32 %v1381, 1.0
        %v1446 = vadd.f32 %v1382, 1.0
        %v1447 = vadd.f32 %v1383, 1.0
        %v1448 = vadd.f32 %v1384, 1.0
        %v1449 = vadd.f32 %v1385, 1.0
        %v1450 = vadd.f32 %v1386, 1.0
        %v1451 = vadd.f32 %v1387, 1.0
        %v1452 = vadd.f32 %v1388, 1.0
        %v1453 = vadd.f32 %v1389, 1.0
        %v1454 = vadd.f32 %v1390, 1.0
        %v1455 = vadd.f32 %v1391, 1.0
        %v1456 = vadd.f32 %v1392, 1.0
        %v1457 = vadd.f32 %v1393, 1.0
        %v1458 = vadd.f32 %v1394, 1.0
        %v1459 = vadd.f32 %v1395, 1.0
        %v1460 = vadd.f32 %v1396, 1.0
        %v1461 = vadd.f32 %v1397, 1.0
        %v1462 = vadd.f32 %v1398, 1.0
        %v1463 = vadd.f32 %v1399, 1.0
        %v1464 = vadd.f32 %v1400, 1.0
        %v1465 = vadd.f32 %v1401, 1.0
        %v1466 = vadd.f32 %v1402, 1.0
        %v1467 = vadd.f32 %v1403, 1.0
        %v1468 = vadd.f32 %v1404, 1.0
        %v1469 = vadd.f32 %v1405, 1.0
        %v1470 = vadd.f32 %v1406, 1.0
        %v1471 = vadd.f32 %v1407, 1.0
        %v1472 = vadd.f32 %v1408, 1.0
        %v1473 = vadd.f32 %v1409, 1.0
        %v1474 = vadd.f32 %v1410, 1.0
        %v1475 = vadd.f32 %v1411, 1.0
        %v1476 = vadd.f32 %v1412, 1.0
        %v1477 = vadd.f32 %v1413, 1.0
        %v1478 = vadd.f32 %v1414, 1.0
        %v1479 = vadd.f32 %v1415, 1.0
        %v1480 = vadd.f32 %v1416, 1.0
        %v1481 = vadd.f32 %v1417, 1.0
        %v1482 = vadd.f32 %v1418, 1.0
        %v1483 = vadd.f32 %v1419, 1.0
        %v1484 = vadd.f32 %v1420, 1.0
        %v1485 = vadd.f32 %v1421, 1.0
        %v1486 = vadd.f32 %v1422, 1.0
        %v1487 = vadd.f32 %v1423, 1.0
        %v1488 = vadd.f32 %v1424, 1.0
        %v1489 = vadd.f32 %v1425, 1.0
        %v1490 = vadd.f32 %v1426, 1.0
        %v1491 = vadd.f32 %v1427, 1.0
        %v1492 = vadd.f32 %v1428, 1.0
        %v1493 = vadd.f32 %v1429, 1.0
        %v1494 = vadd.f32 %v1430, 1.0
        %v1495 = vadd.f32 %v1431, 1.0
        %v1496 = vadd.f32 %v1432, 1.0
        %v1497 = vadd.f32 %v1433, 1.0
        %v1498 = vadd.f32 %v1434, 1.0
        %v1499 = vadd.f32 %v1435, 1.0
        %v1500 = vadd.f32 %v1436, 1.0
        %v1501 = vadd.f32 %v1437, 1.0
        %v1502 = vadd.f32 %v1438, 1.0
        %v1503 = vadd.f32 %v1439, 1.0
        %v1504 = vmul.f32 %v1248, %v1440
        %v1505 = vmul.f32 %v1249, %v1441
        %v1506 = vmul.f32 %v1250, %v1442
        %v1507 = vmul.f32 %v1251, %v1443
        %v1508 = vmul.f32 %v1252, %v1444
        %v1509 = vmul.f32 %v1253, %v1445
        %v1510 = vmul.f32 %v1254, %v1446
        %v1511 = vmul.f32 %v1255, %v1447
        %v1512 = vmul.f32 %v1256, %v1448
        %v1513 = vmul.f32 %v1257, %v1449
        %v1514 = vmul.f32 %v1258, %v1450
        %v1515 = vmul.f32 %v1259, %v1451
        %v1516 = vmul.f32 %v1260, %v1452
        %v1517 = vmul.f32 %v1261, %v1453
        %v1518 = vmul.f32 %v1262, %v1454
        %v1519 = vmul.f32 %v1263, %v1455
        %v1520 = vmul.f32 %v1264, %v1456
        %v1521 = vmul.f32 %v1265, %v1457
        %v1522 = vmul.f32 %v1266, %v1458
        %v1523 = vmul.f32 %v1267, %v1459
        %v1524 = vmul.f32 %v1268, %v1460
        %v1525 = vmul.f32 %v1269, %v1461
        %v1526 = vmul.f32 %v1270, %v1462
        %v1527 = vmul.f32 %v1271, %v1463
        %v1528 = vmul.f32 %v1272, %v1464
        %v1529 = vmul.f32 %v1273, %v1465
        %v1530 = vmul.f32 %v1274, %v1466
        %v1531 = vmul.f32 %v1275, %v1467
        %v1532 = vmul.f32 %v1276, %v1468
        %v1533 = vmul.f32 %v1277, %v1469
        %v1534 = vmul.f32 %v1278, %v1470
        %v1535 = vmul.f32 %v1279, %v1471
        %v1536 = vmul.f32 %v1280, %v1472
        %v1537 = vmul.f32 %v1281, %v1473
        %v1538 = vmul.f32 %v1282, %v1474
        %v1539 = vmul.f32 %v1283, %v1475
        %v1540 = vmul.f32 %v1284, %v1476
        %v1541 = vmul.f32 %v1285, %v1477
        %v1542 = vmul.f32 %v1286, %v1478
        %v1543 = vmul.f32 %v1287, %v1479
        %v1544 = vmul.f32 %v1288, %v1480
        %v1545 = vmul.f32 %v1289, %v1481
        %v1546 = vmul.f32 %v1290, %v1482
        %v1547 = vmul.f32 %v1291, %v1483
        %v1548 = vmul.f32 %v1292, %v1484
        %v1549 = vmul.f32 %v1293, %v1485
        %v1550 = vmul.f32 %v1294, %v1486
        %v1551 = vmul.f32 %v1295, %v1487
        %v1552 = vmul.f32 %v1296, %v1488
        %v1553 = vmul.f32 %v1297, %v1489
        %v1554 = vmul.f32 %v1298, %v1490
        %v1555 = vmul.f32 %v1299, %v1491
        %v1556 = vmul.f32 %v1300, %v1492
        %v1557 = vmul.f32 %v1301, %v1493
        %v1558 = vmul.f32 %v1302, %v1494
        %v1559 = vmul.f32 %v1303, %v1495
        %v1560 = vmul.f32 %v1304, %v1496
        %v1561 = vmul.f32 %v1305, %v1497
        %v1562 = vmul.f32 %v1306, %v1498
        %v1563 = vmul.f32 %v1307, %v1499
        %v1564 = vmul.f32 %v1308, %v1500
        %v1565 = vmul.f32 %v1309, %v1501
        %v1566 = vmul.f32 %v1310, %v1502
        %v1567 = vmul.f32 %v1311, %v1503
        %v1568 = vmul.f32 %v617, %v1504
        %v1569 = vmul.f32 %v619, %v1505
        %v1570 = vmul.f32 %v730, %v1506
        %v1571 = vmul.f32 %v732, %v1507
        %v1572 = vmul.f32 %v621, %v1508
        %v1573 = vmul.f32 %v623, %v1509
        %v1574 = vmul.f32 %v734, %v1510
        %v1575 = vmul.f32 %v736, %v1511
        %v1576 = vmul.f32 %v627, %v1512
        %v1577 = vmul.f32 %v629, %v1513
        %v1578 = vmul.f32 %v740, %v1514
        %v1579 = vmul.f32 %v742, %v1515
        %v1580 = vmul.f32 %v631, %v1516
        %v1581 = vmul.f32 %v633, %v1517
        %v1582 = vmul.f32 %v744, %v1518
        %v1583 = vmul.f32 %v746, %v1519
        %v1584 = vmul.f32 %v637, %v1520
        %v1585 = vmul.f32 %v639, %v1521
        %v1586 = vmul.f32 %v750, %v1522
        %v1587 = vmul.f32 %v752, %v1523
        %v1588 = vmul.f32 %v641, %v1524
        %v1589 = vmul.f32 %v643, %v1525
        %v1590 = vmul.f32 %v754, %v1526
        %v1591 = vmul.f32 %v756, %v1527
        %v1592 = vmul.f32 %v647, %v1528
        %v1593 = vmul.f32 %v649, %v1529
        %v1594 = vmul.f32 %v760, %v1530
        %v1595 = vmul.f32 %v762, %v1531
        %v1596 = vmul.f32 %v651, %v1532
        %v1597 = vmul.f32 %v653, %v1533
        %v1598 = vmul.f32 %v764, %v1534
        %v1599 = vmul.f32 %v766, %v1535
        %v1600 = vmul.f32 %v657, %v1536
        %v1601 = vmul.f32 %v659, %v1537
        %v1602 = vmul.f32 %v770, %v1538
        %v1603 = vmul.f32 %v772, %v1539
        %v1604 = vmul.f32 %v661, %v1540
        %v1605 = vmul.f32 %v663, %v1541
        %v1606 = vmul.f32 %v774, %v1542
        %v1607 = vmul.f32 %v776, %v1543
        %v1608 = vmul.f32 %v667, %v1544
        %v1609 = vmul.f32 %v669, %v1545
        %v1610 = vmul.f32 %v780, %v1546
        %v1611 = vmul.f32 %v782, %v1547
        %v1612 = vmul.f32 %v671, %v1548
        %v1613 = vmul.f32 %v673, %v1549
        %v1614 = vmul.f32 %v784, %v1550
        %v1615 = vmul.f32 %v786, %v1551
        %v1616 = vmul.f32 %v677, %v1552
        %v1617 = vmul.f32 %v679, %v1553
        %v1618 = vmul.f32 %v790, %v1554
        %v1619 = vmul.f32 %v792, %v1555
        %v1620 = vmul.f32 %v681, %v1556
        %v1621 = vmul.f32 %v683, %v1557
        %v1622 = vmul.f32 %v794, %v1558
        %v1623 = vmul.f32 %v796, %v1559
        %v1624 = vmul.f32 %v687, %v1560
        %v1625 = vmul.f32 %v689, %v1561
        %v1626 = vmul.f32 %v800, %v1562
        %v1627 = vmul.f32 %v802, %v1563
        %v1628 = vmul.f32 %v691, %v1564
        %v1629 = vmul.f32 %v693, %v1565
        %v1630 = vmul.f32 %v804, %v1566
        %v1631 = vmul.f32 %v806, %v1567
        %v1632 = vpack.c.bf16 %v1572, %v1568
        %v1633 = vpack.c.bf16 %v1573, %v1569
        %v1634 = vpack.c.bf16 %v1574, %v1570
        %v1635 = vpack.c.bf16 %v1575, %v1571
        %v1636 = vpack.c.bf16 %v1580, %v1576
        %v1637 = vpack.c.bf16 %v1581, %v1577
        %v1638 = vpack.c.bf16 %v1582, %v1578
        %v1639 = vpack.c.bf16 %v1583, %v1579
        %v1640 = vpack.c.bf16 %v1588, %v1584
        %v1641 = vpack.c.bf16 %v1589, %v1585
        %v1642 = vpack.c.bf16 %v1590, %v1586
        %v1643 = vpack.c.bf16 %v1591, %v1587
        %v1644 = vpack.c.bf16 %v1596, %v1592
        %v1645 = vpack.c.bf16 %v1597, %v1593
        %v1646 = vpack.c.bf16 %v1598, %v1594
        %v1647 = vpack.c.bf16 %v1599, %v1595
        %v1648 = vpack.c.bf16 %v1604, %v1600
        %v1649 = vpack.c.bf16 %v1605, %v1601
        %v1650 = vpack.c.bf16 %v1606, %v1602
        %v1651 = vpack.c.bf16 %v1607, %v1603
        %v1652 = vpack.c.bf16 %v1612, %v1608
        %v1653 = vpack.c.bf16 %v1613, %v1609
        %v1654 = vpack.c.bf16 %v1614, %v1610
        %v1655 = vpack.c.bf16 %v1615, %v1611
        %v1656 = vpack.c.bf16 %v1620, %v1616
        %v1657 = vpack.c.bf16 %v1621, %v1617
        %v1658 = vpack.c.bf16 %v1622, %v1618
        %v1659 = vpack.c.bf16 %v1623, %v1619
        %v1660 = vpack.c.bf16 %v1628, %v1624
        %v1661 = vpack.c.bf16 %v1629, %v1625
        %v1662 = vpack.c.bf16 %v1630, %v1626
        %v1663 = vpack.c.bf16 %v1631, %v1627
        %v1664 = vld [vmem:[#allocation8] sm:$0xf]
        %v1665 = vld [vmem:[#allocation8 + $0x4] sm:$0xf]
        %v1666 = vld [vmem:[#allocation8 + $0x8] sm:$0xf]
        %v1667 = vld [vmem:[#allocation8 + $0xc] sm:$0xf]
        %v1668 = vld [vmem:[#allocation8 + $0x10] sm:$0xf]
        %v1669 = vld [vmem:[#allocation8 + $0x14] sm:$0xf]
        %v1670 = vld [vmem:[#allocation8 + $0x18] sm:$0xf]
        %v1671 = vld [vmem:[#allocation8 + $0x1c] sm:$0xf]
        %v1672 = vld [vmem:[#allocation8 + $0x20] sm:$0xf]
        %v1673 = vld [vmem:[#allocation8 + $0x24] sm:$0xf]
        %v1674 = vld [vmem:[#allocation8 + $0x28] sm:$0xf]
        %v1675 = vld [vmem:[#allocation8 + $0x2c] sm:$0xf]
        %v1676 = vld [vmem:[#allocation8 + $0x30] sm:$0xf]
        %v1677 = vld [vmem:[#allocation8 + $0x34] sm:$0xf]
        %v1678 = vld [vmem:[#allocation8 + $0x38] sm:$0xf]
        %v1679 = vld [vmem:[#allocation8 + $0x3c] sm:$0xf]
        %v1680 = vld [vmem:[#allocation8 + $0x40] sm:$0xf]
        %v1681 = vld [vmem:[#allocation8 + $0x44] sm:$0xf]
        %v1682 = vld [vmem:[#allocation8 + $0x48] sm:$0xf]
        %v1683 = vld [vmem:[#allocation8 + $0x4c] sm:$0xf]
        %v1684 = vld [vmem:[#allocation8 + $0x50] sm:$0xf]
        %v1685 = vld [vmem:[#allocation8 + $0x54] sm:$0xf]
        %v1686 = vld [vmem:[#allocation8 + $0x58] sm:$0xf]
        %v1687 = vld [vmem:[#allocation8 + $0x5c] sm:$0xf]
        %v1688 = vld [vmem:[#allocation8 + $0x60] sm:$0xf]
        %v1689 = vld [vmem:[#allocation8 + $0x64] sm:$0xf]
        %v1690 = vld [vmem:[#allocation8 + $0x68] sm:$0xf]
        %v1691 = vld [vmem:[#allocation8 + $0x6c] sm:$0xf]
        %v1692 = vld [vmem:[#allocation8 + $0x70] sm:$0xf]
        %v1693 = vld [vmem:[#allocation8 + $0x74] sm:$0xf]
        %v1694 = vld [vmem:[#allocation8 + $0x78] sm:$0xf]
        %v1695 = vld [vmem:[#allocation8 + $0x7c] sm:$0xf]
        %v1696 = vld [vmem:[#allocation8 + $0x80] sm:$0xf]
        %v1697 = vld [vmem:[#allocation8 + $0x84] sm:$0xf]
        %v1698 = vld [vmem:[#allocation8 + $0x88] sm:$0xf]
        %v1699 = vld [vmem:[#allocation8 + $0x8c] sm:$0xf]
        %v1700 = vld [vmem:[#allocation8 + $0x90] sm:$0xf]
        %v1701 = vld [vmem:[#allocation8 + $0x94] sm:$0xf]
        %v1702 = vld [vmem:[#allocation8 + $0x98] sm:$0xf]
        %v1703 = vld [vmem:[#allocation8 + $0x9c] sm:$0xf]
        %v1704 = vld [vmem:[#allocation8 + $0xa0] sm:$0xf]
        %v1705 = vld [vmem:[#allocation8 + $0xa4] sm:$0xf]
        %v1706 = vld [vmem:[#allocation8 + $0xa8] sm:$0xf]
        %v1707 = vld [vmem:[#allocation8 + $0xac] sm:$0xf]
        %v1708 = vld [vmem:[#allocation8 + $0xb0] sm:$0xf]
        %v1709 = vld [vmem:[#allocation8 + $0xb4] sm:$0xf]
        %v1710 = vld [vmem:[#allocation8 + $0xb8] sm:$0xf]
        %v1711 = vld [vmem:[#allocation8 + $0xbc] sm:$0xf]
        %v1712 = vld [vmem:[#allocation8 + $0xc0] sm:$0xf]
        %v1713 = vld [vmem:[#allocation8 + $0xc4] sm:$0xf]
        %v1714 = vld [vmem:[#allocation8 + $0xc8] sm:$0xf]
        %v1715 = vld [vmem:[#allocation8 + $0xcc] sm:$0xf]
        %v1716 = vld [vmem:[#allocation8 + $0xd0] sm:$0xf]
        %v1717 = vld [vmem:[#allocation8 + $0xd4] sm:$0xf]
        %v1718 = vld [vmem:[#allocation8 + $0xd8] sm:$0xf]
        %v1719 = vld [vmem:[#allocation8 + $0xdc] sm:$0xf]
        %v1720 = vld [vmem:[#allocation8 + $0xe0] sm:$0xf]
        %v1721 = vld [vmem:[#allocation8 + $0xe4] sm:$0xf]
        %v1722 = vld [vmem:[#allocation8 + $0xe8] sm:$0xf]
        %v1723 = vld [vmem:[#allocation8 + $0xec] sm:$0xf]
        %v1724 = vld [vmem:[#allocation8 + $0xf0] sm:$0xf]
        %v1725 = vld [vmem:[#allocation8 + $0xf4] sm:$0xf]
        %v1726 = vld [vmem:[#allocation8 + $0xf8] sm:$0xf]
        %v1727 = vld [vmem:[#allocation8 + $0xfc] sm:$0xf]
        %v1728 = vld [vmem:[%s6] sm:$0x1]
        %v1730 = vlaneseq
        %v1731 = vshrl.u32 %v1730, 7
        %v1732 = vsub.s32 0, %v1731
        %v1733 = vrot.slane %v1728, %v1732
        %v1799 = vunpack.c.l.b16 %v1664
        %v1800 = vunpack.c.l.b16 %v1665
        %v1801 = vunpack.c.l.b16 %v1666
        %v1802 = vunpack.c.l.b16 %v1667
        %v1803 = vunpack.c.l.b16 %v1668
        %v1804 = vunpack.c.l.b16 %v1669
        %v1805 = vunpack.c.l.b16 %v1670
        %v1806 = vunpack.c.l.b16 %v1671
        %v1807 = vunpack.c.l.b16 %v1672
        %v1808 = vunpack.c.l.b16 %v1673
        %v1809 = vunpack.c.l.b16 %v1674
        %v1810 = vunpack.c.l.b16 %v1675
        %v1811 = vunpack.c.l.b16 %v1676
        %v1812 = vunpack.c.l.b16 %v1677
        %v1813 = vunpack.c.l.b16 %v1678
        %v1814 = vunpack.c.l.b16 %v1679
        %v1815 = vunpack.c.l.b16 %v1680
        %v1816 = vunpack.c.l.b16 %v1681
        %v1817 = vunpack.c.l.b16 %v1682
        %v1818 = vunpack.c.l.b16 %v1683
        %v1819 = vunpack.c.l.b16 %v1684
        %v1820 = vunpack.c.l.b16 %v1685
        %v1821 = vunpack.c.l.b16 %v1686
        %v1822 = vunpack.c.l.b16 %v1687
        %v1823 = vunpack.c.l.b16 %v1688
        %v1824 = vunpack.c.l.b16 %v1689
        %v1825 = vunpack.c.l.b16 %v1690
        %v1826 = vunpack.c.l.b16 %v1691
        %v1827 = vunpack.c.l.b16 %v1692
        %v1828 = vunpack.c.l.b16 %v1693
        %v1829 = vunpack.c.l.b16 %v1694
        %v1830 = vunpack.c.l.b16 %v1695
        %v1831 = vunpack.c.l.b16 %v1696
        %v1832 = vunpack.c.l.b16 %v1697
        %v1833 = vunpack.c.l.b16 %v1698
        %v1834 = vunpack.c.l.b16 %v1699
        %v1835 = vunpack.c.l.b16 %v1700
        %v1836 = vunpack.c.l.b16 %v1701
        %v1837 = vunpack.c.l.b16 %v1702
        %v1838 = vunpack.c.l.b16 %v1703
        %v1839 = vunpack.c.l.b16 %v1704
        %v1840 = vunpack.c.l.b16 %v1705
        %v1841 = vunpack.c.l.b16 %v1706
        %v1842 = vunpack.c.l.b16 %v1707
        %v1843 = vunpack.c.l.b16 %v1708
        %v1844 = vunpack.c.l.b16 %v1709
        %v1845 = vunpack.c.l.b16 %v1710
        %v1846 = vunpack.c.l.b16 %v1711
        %v1847 = vunpack.c.l.b16 %v1712
        %v1848 = vunpack.c.l.b16 %v1713
        %v1849 = vunpack.c.l.b16 %v1714
        %v1850 = vunpack.c.l.b16 %v1715
        %v1851 = vunpack.c.l.b16 %v1716
        %v1852 = vunpack.c.l.b16 %v1717
        %v1853 = vunpack.c.l.b16 %v1718
        %v1854 = vunpack.c.l.b16 %v1719
        %v1855 = vunpack.c.l.b16 %v1720
        %v1856 = vunpack.c.l.b16 %v1721
        %v1857 = vunpack.c.l.b16 %v1722
        %v1858 = vunpack.c.l.b16 %v1723
        %v1859 = vunpack.c.l.b16 %v1724
        %v1860 = vunpack.c.l.b16 %v1725
        %v1861 = vunpack.c.l.b16 %v1726
        %v1862 = vunpack.c.l.b16 %v1727
        %v1863 = vpack.c.b16 %v1800, %v1799
        %v1864 = vpack.c.b16 %v1802, %v1801
        %v1865 = vpack.c.b16 %v1804, %v1803
        %v1866 = vpack.c.b16 %v1806, %v1805
        %v1867 = vpack.c.b16 %v1808, %v1807
        %v1868 = vpack.c.b16 %v1810, %v1809
        %v1869 = vpack.c.b16 %v1812, %v1811
        %v1870 = vpack.c.b16 %v1814, %v1813
        %v1871 = vpack.c.b16 %v1816, %v1815
        %v1872 = vpack.c.b16 %v1818, %v1817
        %v1873 = vpack.c.b16 %v1820, %v1819
        %v1874 = vpack.c.b16 %v1822, %v1821
        %v1875 = vpack.c.b16 %v1824, %v1823
        %v1876 = vpack.c.b16 %v1826, %v1825
        %v1877 = vpack.c.b16 %v1828, %v1827
        %v1878 = vpack.c.b16 %v1830, %v1829
        %v1879 = vpack.c.b16 %v1832, %v1831
        %v1880 = vpack.c.b16 %v1834, %v1833
        %v1881 = vpack.c.b16 %v1836, %v1835
        %v1882 = vpack.c.b16 %v1838, %v1837
        %v1883 = vpack.c.b16 %v1840, %v1839
        %v1884 = vpack.c.b16 %v1842, %v1841
        %v1885 = vpack.c.b16 %v1844, %v1843
        %v1886 = vpack.c.b16 %v1846, %v1845
        %v1887 = vpack.c.b16 %v1848, %v1847
        %v1888 = vpack.c.b16 %v1850, %v1849
        %v1889 = vpack.c.b16 %v1852, %v1851
        %v1890 = vpack.c.b16 %v1854, %v1853
        %v1891 = vpack.c.b16 %v1856, %v1855
        %v1892 = vpack.c.b16 %v1858, %v1857
        %v1893 = vpack.c.b16 %v1860, %v1859
        %v1894 = vpack.c.b16 %v1862, %v1861
        %1927 = vmatprep.subr.bf16.mxu0 0
        %1928 = vmatpush1.bf16.msra.mxu0 %v1863
        %1929 = vmatprep.subr.bf16.mxu0 0
        %1930 = vmatpush1.bf16.msra.mxu0 %v1864
        %1931 = vmatprep.subr.bf16.mxu0 0
        %1932 = vmatpush1.bf16.msra.mxu0 %v1865
        %1933 = vmatprep.subr.bf16.mxu0 0
        %1934 = vmatpush1.bf16.msra.mxu0 %v1866
        %1935 = vmatprep.subr.bf16.mxu0 0
        %1936 = vmatpush1.bf16.msra.mxu0 %v1867
        %1937 = vmatprep.subr.bf16.mxu0 0
        %1938 = vmatpush1.bf16.msra.mxu0 %v1868
        %1939 = vmatprep.subr.bf16.mxu0 0
        %1940 = vmatpush1.bf16.msra.mxu0 %v1869
        %1941 = vmatprep.subr.bf16.mxu0 0
        %1942 = vmatpush1.bf16.msra.mxu0 %v1870
        %1943 = vmatprep.subr.bf16.mxu0 0
        %1944 = vmatpush1.bf16.msra.mxu0 %v1871
        %1945 = vmatprep.subr.bf16.mxu0 0
        %1946 = vmatpush1.bf16.msra.mxu0 %v1872
        %1947 = vmatprep.subr.bf16.mxu0 0
        %1948 = vmatpush1.bf16.msra.mxu0 %v1873
        %1949 = vmatprep.subr.bf16.mxu0 0
        %1950 = vmatpush1.bf16.msra.mxu0 %v1874
        %1951 = vmatprep.subr.bf16.mxu0 0
        %1952 = vmatpush1.bf16.msra.mxu0 %v1875
        %1953 = vmatprep.subr.bf16.mxu0 0
        %1954 = vmatpush1.bf16.msra.mxu0 %v1876
        %1955 = vmatprep.subr.bf16.mxu0 0
        %1956 = vmatpush1.bf16.msra.mxu0 %v1877
        %1957 = vmatprep.subr.bf16.mxu0 0
        %1958 = vmatpush1.bf16.msra.mxu0 %v1878
        %1959 = vmatprep.mubr.bf16.mxu0 %v1633
        %1960 = vmatmul.mubr.bf16.gmra.mrb[0].mxu0 %v1632
        %v1961 = vpop.f32.mrb[0].mxu0
        %v1962 = vadd.f32 %v1733, %v1961
        %v1963 = vpop.f32.mrb[0].mxu0
        %v1964 = vpop.f32.mrb[0].mxu0
        %v1965 = vadd.f32 %v1733, %v1964
        %v1966 = vpop.f32.mrb[0].mxu0
        %1967 = vmatprep.mubr.bf16.mxu0 %v1637
        %1968 = vmatmul.mubr.bf16.gmra.mrb[0].mxu0 %v1636
        %v1969 = vpop.f32.mrb[0].mxu0
        %v1970 = vadd.f32 %v1733, %v1969
        %v1971 = vpop.f32.mrb[0].mxu0
        %v1972 = vpop.f32.mrb[0].mxu0
        %v1973 = vadd.f32 %v1733, %v1972
        %v1974 = vpop.f32.mrb[0].mxu0
        %1975 = vmatprep.mubr.bf16.mxu0 %v1641
        %1976 = vmatmul.mubr.bf16.gmra.mrb[0].mxu0 %v1640
        %v1977 = vpop.f32.mrb[0].mxu0
        %v1978 = vadd.f32 %v1733, %v1977
        %v1979 = vpop.f32.mrb[0].mxu0
        %v1980 = vpop.f32.mrb[0].mxu0
        %v1981 = vadd.f32 %v1733, %v1980
        %v1982 = vpop.f32.mrb[0].mxu0
        %1983 = vmatprep.mubr.bf16.mxu0 %v1645
        %1984 = vmatmul.mubr.bf16.gmra.mrb[0].mxu0 %v1644
        %v1985 = vpop.f32.mrb[0].mxu0
        %v1986 = vadd.f32 %v1733, %v1985
        %v1987 = vpop.f32.mrb[0].mxu0
        %v1988 = vpop.f32.mrb[0].mxu0
        %v1989 = vadd.f32 %v1733, %v1988
        %v1990 = vpop.f32.mrb[0].mxu0
        %1991 = vmatprep.mubr.bf16.mxu0 %v1649
        %1992 = vmatmul.mubr.bf16.gmra.mrb[0].mxu0 %v1648
        %v1993 = vpop.f32.mrb[0].mxu0
        %v1994 = vadd.f32 %v1733, %v1993
        %v1995 = vpop.f32.mrb[0].mxu0
        %v1996 = vpop.f32.mrb[0].mxu0
        %v1997 = vadd.f32 %v1733, %v1996
        %v1998 = vpop.f32.mrb[0].mxu0
        %1999 = vmatprep.mubr.bf16.mxu0 %v1653
        %2000 = vmatmul.mubr.bf16.gmra.mrb[0].mxu0 %v1652
        %v2001 = vpop.f32.mrb[0].mxu0
        %v2002 = vadd.f32 %v1733, %v2001
        %v2003 = vpop.f32.mrb[0].mxu0
        %v2004 = vpop.f32.mrb[0].mxu0
        %v2005 = vadd.f32 %v1733, %v2004
        %v2006 = vpop.f32.mrb[0].mxu0
        %2007 = vmatprep.mubr.bf16.mxu0 %v1657
        %2008 = vmatmul.mubr.bf16.gmra.mrb[0].mxu0 %v1656
        %v2009 = vpop.f32.mrb[0].mxu0
        %v2010 = vadd.f32 %v1733, %v2009
        %v2011 = vpop.f32.mrb[0].mxu0
        %v2012 = vpop.f32.mrb[0].mxu0
        %v2013 = vadd.f32 %v1733, %v2012
        %v2014 = vpop.f32.mrb[0].mxu0
        %2015 = vmatprep.mubr.bf16.mxu0 %v1661
        %2016 = vmatmul.mubr.bf16.gmra.mrb[0].mxu0 %v1660
        %v2017 = vpop.f32.mrb[0].mxu0
        %v2018 = vadd.f32 %v1733, %v2017
        %v2019 = vpop.f32.mrb[0].mxu0
        %v2020 = vpop.f32.mrb[0].mxu0
        %v2021 = vadd.f32 %v1733, %v2020
        %v2022 = vpop.f32.mrb[0].mxu0
        %2023 = vdwg.mxu0
        %2024 = vmatprep.subr.bf16.mxu0 0
        %2025 = vmatpush1.bf16.msra.mxu0 %v1879
        %2026 = vmatprep.subr.bf16.mxu0 0
        %2027 = vmatpush1.bf16.msra.mxu0 %v1880
        %2028 = vmatprep.subr.bf16.mxu0 0
        %2029 = vmatpush1.bf16.msra.mxu0 %v1881
        %2030 = vmatprep.subr.bf16.mxu0 0
        %2031 = vmatpush1.bf16.msra.mxu0 %v1882
        %2032 = vmatprep.subr.bf16.mxu0 0
        %2033 = vmatpush1.bf16.msra.mxu0 %v1883
        %2034 = vmatprep.subr.bf16.mxu0 0
        %2035 = vmatpush1.bf16.msra.mxu0 %v1884
        %2036 = vmatprep.subr.bf16.mxu0 0
        %2037 = vmatpush1.bf16.msra.mxu0 %v1885
        %2038 = vmatprep.subr.bf16.mxu0 0
        %2039 = vmatpush1.bf16.msra.mxu0 %v1886
        %2040 = vmatprep.subr.bf16.mxu0 0
        %2041 = vmatpush1.bf16.msra.mxu0 %v1887
        %2042 = vmatprep.subr.bf16.mxu0 0
        %2043 = vmatpush1.bf16.msra.mxu0 %v1888
        %2044 = vmatprep.subr.bf16.mxu0 0
        %2045 = vmatpush1.bf16.msra.mxu0 %v1889
        %2046 = vmatprep.subr.bf16.mxu0 0
        %2047 = vmatpush1.bf16.msra.mxu0 %v1890
        %2048 = vmatprep.subr.bf16.mxu0 0
        %2049 = vmatpush1.bf16.msra.mxu0 %v1891
        %2050 = vmatprep.subr.bf16.mxu0 0
        %2051 = vmatpush1.bf16.msra.mxu0 %v1892
        %2052 = vmatprep.subr.bf16.mxu0 0
        %2053 = vmatpush1.bf16.msra.mxu0 %v1893
        %2054 = vmatprep.subr.bf16.mxu0 0
        %2055 = vmatpush1.bf16.msra.mxu0 %v1894
        %2056 = vmatprep.mubr.bf16.mxu0 %v1635
        %2057 = vmatmul.mubr.bf16.gmra.mrb[0].mxu0 %v1634
        %v2058 = vpop.f32.mrb[0].mxu0
        %v2059 = vadd.f32 %v1962, %v2058
        %v2060 = vpop.f32.mrb[0].mxu0
        %v2061 = vpop.f32.mrb[0].mxu0
        %v2062 = vadd.f32 %v1965, %v2061
        %v2063 = vpop.f32.mrb[0].mxu0
        %2064 = vmatprep.mubr.bf16.mxu0 %v1639
        %2065 = vmatmul.mubr.bf16.gmra.mrb[0].mxu0 %v1638
        %v2066 = vpop.f32.mrb[0].mxu0
        %v2067 = vadd.f32 %v1970, %v2066
        %v2068 = vpop.f32.mrb[0].mxu0
        %v2069 = vpop.f32.mrb[0].mxu0
        %v2070 = vadd.f32 %v1973, %v2069
        %v2071 = vpop.f32.mrb[0].mxu0
        %2072 = vmatprep.mubr.bf16.mxu0 %v1643
        %2073 = vmatmul.mubr.bf16.gmra.mrb[0].mxu0 %v1642
        %v2074 = vpop.f32.mrb[0].mxu0
        %v2075 = vadd.f32 %v1978, %v2074
        %v2076 = vpop.f32.mrb[0].mxu0
        %v2077 = vpop.f32.mrb[0].mxu0
        %v2078 = vadd.f32 %v1981, %v2077
        %v2079 = vpop.f32.mrb[0].mxu0
        %2080 = vmatprep.mubr.bf16.mxu0 %v1647
        %2081 = vmatmul.mubr.bf16.gmra.mrb[0].mxu0 %v1646
        %v2082 = vpop.f32.mrb[0].mxu0
        %v2083 = vadd.f32 %v1986, %v2082
        %v2084 = vpop.f32.mrb[0].mxu0
        %v2085 = vpop.f32.mrb[0].mxu0
        %v2086 = vadd.f32 %v1989, %v2085
        %v2087 = vpop.f32.mrb[0].mxu0
        %2088 = vmatprep.mubr.bf16.mxu0 %v1651
        %2089 = vmatmul.mubr.bf16.gmra.mrb[0].mxu0 %v1650
        %v2090 = vpop.f32.mrb[0].mxu0
        %v2091 = vadd.f32 %v1994, %v2090
        %v2092 = vpop.f32.mrb[0].mxu0
        %v2093 = vpop.f32.mrb[0].mxu0
        %v2094 = vadd.f32 %v1997, %v2093
        %v2095 = vpop.f32.mrb[0].mxu0
        %2096 = vmatprep.mubr.bf16.mxu0 %v1655
        %2097 = vmatmul.mubr.bf16.gmra.mrb[0].mxu0 %v1654
        %v2098 = vpop.f32.mrb[0].mxu0
        %v2099 = vadd.f32 %v2002, %v2098
        %v2100 = vpop.f32.mrb[0].mxu0
        %v2101 = vpop.f32.mrb[0].mxu0
        %v2102 = vadd.f32 %v2005, %v2101
        %v2103 = vpop.f32.mrb[0].mxu0
        %2104 = vmatprep.mubr.bf16.mxu0 %v1659
        %2105 = vmatmul.mubr.bf16.gmra.mrb[0].mxu0 %v1658
        %v2106 = vpop.f32.mrb[0].mxu0
        %v2107 = vadd.f32 %v2010, %v2106
        %v2108 = vpop.f32.mrb[0].mxu0
        %v2109 = vpop.f32.mrb[0].mxu0
        %v2110 = vadd.f32 %v2013, %v2109
        %v2111 = vpop.f32.mrb[0].mxu0
        %2112 = vmatprep.mubr.bf16.mxu0 %v1663
        %2113 = vmatmul.mubr.bf16.gmra.mrb[0].mxu0 %v1662
        %v2114 = vpop.f32.mrb[0].mxu0
        %v2115 = vadd.f32 %v2018, %v2114
        %v2116 = vpop.f32.mrb[0].mxu0
        %v2117 = vpop.f32.mrb[0].mxu0
        %v2118 = vadd.f32 %v2021, %v2117
        %v2119 = vpop.f32.mrb[0].mxu0
        %2120 = vdwg.mxu0
        %2121 = vst [vmem:[%s340] sm:$0xff] %v2059
        %2122 = vst [vmem:[%s340 + $0x8] sm:$0xff] %v2062
        %2123 = vst [vmem:[%s340 + $0x10] sm:$0xff] %v2067
        %2124 = vst [vmem:[%s340 + $0x18] sm:$0xff] %v2070
        %2125 = vst [vmem:[%s340 + $0x20] sm:$0xff] %v2075
        %2126 = vst [vmem:[%s340 + $0x28] sm:$0xff] %v2078
        %2127 = vst [vmem:[%s340 + $0x30] sm:$0xff] %v2083
        %2128 = vst [vmem:[%s340 + $0x38] sm:$0xff] %v2086
        %2129 = vst [vmem:[%s340 + $0x40] sm:$0xff] %v2091
        %2130 = vst [vmem:[%s340 + $0x48] sm:$0xff] %v2094
        %2131 = vst [vmem:[%s340 + $0x50] sm:$0xff] %v2099
        %2132 = vst [vmem:[%s340 + $0x58] sm:$0xff] %v2102
        %2133 = vst [vmem:[%s340 + $0x60] sm:$0xff] %v2107
        %2134 = vst [vmem:[%s340 + $0x68] sm:$0xff] %v2110
        %2135 = vst [vmem:[%s340 + $0x70] sm:$0xff] %v2115
        %2136 = vst [vmem:[%s340 + $0x78] sm:$0xff] %v2118
        %s2137 = sand.u32 %s186, 1
        %s2138 = scalar_lea.sflag [#allocation4], %s2137
        %s2139 = sand.u32 %s186, 1
        %s2140 = smul.addr %s2139, 128
        %s2141 = scalar_lea.vmem [#allocation10], %s2140
        // Predicated region
        $region65: #{feed_forward.1} parent=47 // pred_check
          %p2142 = pneg %p196
        $region66: #{feed_forward.1} parent=47 // pred_check_branch
          %2144 = sbr.rel (%p2142) target = $region68
        $region67: #{feed_forward.1} parent=47 // pred_region
          %s2145 = smul.u32 16, %s26
          %s2147 = ssub.s32 2048, 2048
          %2148 = vsyncadd %s2138, %s2147
          %s2149 = smul.addr %s2145, 128
          %s2150 = scalar_lea.hbm %s7, %s2149
          %s2151 = sshll.u32 %s2141, 4
          %s2152 = int_to_ptr.vmem [resolvable:$true] %s2151
          %2157 = dma.vmem_to_hbm [thread:$0]  %s2152, 2048, %s2150, %s2138, 128, 128, 8
        $region68: #{feed_forward.1} parent=47 // pred_fallthru
          _
      $region48: #{feed_forward.1} parent=5 // pred_fallthru
        _
      %p2158 = scmp.le.s32.totalorder 2, %s21
      // Predicated region
      $region69: #{feed_forward.1} parent=5 // pred_check
        %p2159 = pneg %p2158
      $region70: #{feed_forward.1} parent=5 // pred_check_branch
        %2161 = sbr.rel (%p2159) target = $region72
      $region71: #{feed_forward.1} parent=5 // pred_region
        %s2162 = ssub.s32 %s21, 2
        // Predicated region
        $region73: #{feed_forward.1} parent=71 // pred_check
          %p2163 = pneg %p202
        $region74: #{feed_forward.1} parent=71 // pred_check_branch
          %2165 = sbr.rel (%p2163) target = $region76
        $region75: #{feed_forward.1} parent=71 // pred_region
          %s2166 = sand.u32 %s187, 1
          %s2167 = scalar_lea.sflag [#allocation4], %s2166
          %s2168 = sand.u32 %s187, 1
          %s2169 = smul.addr %s2168, 128
          %s2170 = scalar_lea.vmem [#allocation10], %s2169
          %2171 = dma.done %s2167, 2048
        $region76: #{feed_forward.1} parent=71 // pred_fallthru
          _
      $region72: #{feed_forward.1} parent=5 // pred_fallthru
        _
    $region6: #{feed_forward.1} parent=1 // loop_footer
      %s25 = sadd.s32 1, %s21
    $region7: #{feed_forward.1} parent=1 // loop_footer_branch
      %20 = sbr.rel target = $region3
    $region8: #{feed_forward.1} parent=1 // loop_exit
      _
    %2172 = vsyncpa [#allocation3], 1
    %s2173 = scalar_lea.sflag [#allocation3], 1
    %2174 = vsyncpa %s2173, 1
    %2175 = vsyncpa [#allocation6], 1
    %2176 = vsyncpa [#allocation9], 1
    %2177 = vsyncpa [#allocation4], 1
    %s2178 = scalar_lea.sflag [#allocation4], 1
    %2179 = vsyncpa %s2178, 1

</llo_original>
